<compile_context>
chip_gen: v6e
topology: v6e:2x2x1
jax: 0.10.0
libtpu: 0.0.40
codegen_flags: <defaults>
</compile_context>

<pallas_src>
import functools

import jax
import jax.numpy as jnp
from jax import lax
from jax.experimental import pallas as pl
from jax.experimental.pallas import tpu as pltpu


def _round_up(v, m):
    return ((v + m - 1) // m) * m


# ----------------------------- Pallas kernel --------------------------------
def _bottleneck_kernel(x_ref, xu_ref, xd_ref, w1_ref, b1_ref, w2_ref, b2_ref,
                       w3_ref, b3_ref, out_ref, pad_ref, *, dilation, dl):
    d = dilation
    _, TH, W, Cin = x_ref.shape
    Cmid = w1_ref.shape[1]
    HB = TH + 2 * d                                   # rows incl. halo
    Wp = pad_ref.shape[1]

    i = pl.program_id(1)
    n_tiles = pl.num_programs(1)

    f32, bf16 = jnp.float32, jnp.bfloat16
    b1 = b1_ref[...]
    b2 = b2_ref[...]
    b3 = b3_ref[...]

    # ---- conv1 (1x1) on the halo-extended row window: ONE MXU matmul -------
    x_core = x_ref[...]                                           # (1,TH,W,Cin) f32
    x_ext = jnp.concatenate([xu_ref[...], x_core, xd_ref[...]], axis=1)  # (1,HB,W,Cin)
    h1 = jnp.dot(x_ext.reshape(HB * W, Cin).astype(bf16), w1_ref[...],
                 preferred_element_type=f32) + b1
    h1 = jnp.maximum(h1, 0.0).reshape(HB, W, Cmid)

    # zero halo rows falling outside the image (conv2 "same" zero padding).
    # (HB,1,1) iota + broadcast in the select: only HB compares, not HB*W*Cmid.
    r = lax.broadcasted_iota(jnp.int32, (HB, 1, 1), 0)
    valid = ((r >= d) | (i > 0)) & ((r < d + TH) | (i < n_tiles - 1))
    h1 = jnp.where(valid, h1, 0.0)

    # ---- stage h1 into the column-padded VMEM scratch -----------------------
    # Only the thin left/right zero strips are rewritten (every step, so each
    # core's private scratch is always valid under megacore sharding); the
    # interior store is sublane-aligned because `dl` is a multiple of 8.
    pad_ref[:, 0:dl, :] = jnp.zeros((HB, dl, Cmid), f32)
    pad_ref[:, dl + W:Wp, :] = jnp.zeros((HB, Wp - dl - W, Cmid), f32)
    pad_ref[:, dl:dl + W, :] = h1

    # ---- conv2 (3x3 dilated): 9 taps stacked along K -> ONE matmul ----------
    taps = []
    for ky in range(3):
        for kx in range(3):
            c0 = dl + (kx - 1) * d
            taps.append(pad_ref[ky * d:ky * d + TH, c0:c0 + W, :].astype(bf16))
    a = jnp.concatenate(taps, axis=-1).reshape(TH * W, 9 * Cmid)
    h2 = jnp.maximum(jnp.dot(a, w2_ref[...], preferred_element_type=f32) + b2, 0.0)

    # ---- conv3 (1x1) back to Cin, ReLU, residual add (f32) ------------------
    h3 = jnp.dot(h2.astype(bf16), w3_ref[...], preferred_element_type=f32) + b3
    h3 = jnp.maximum(h3, 0.0).reshape(1, TH, W, Cin)
    out_ref[...] = (h3 + x_core).astype(out_ref.dtype)


# ------------------------------- wrapper -------------------------------------
def _pick_tile_h(H, d, cap=64):
    divs = [t for t in range(1, H + 1) if H % t == 0 and t % d == 0]
    # TODO(synk): when dilation does not divide H a different halo scheme is needed.
    assert divs, "need dilation | some divisor of H for the halo BlockSpecs"
    small = [t for t in divs if t <= cap]
    return max(small) if small else min(divs)


def bottleneck_forward(x_nchw, kp, dilation, *, tile_h=None):
    """x_nchw: (N, Cin, H, W) float32. Returns (N, Cin, H, W) float32."""
    d = int(dilation)
    x = jnp.transpose(x_nchw, (0, 2, 3, 1))                     # -> NHWC
    N, H, W, Cin = x.shape
    Cp_in, Cp_mid = kp["w1"].shape

    # lane-dense channel padding (zeros propagate to zeros through the block)
    x_p = jnp.pad(x, ((0, 0), (0, 0), (0, 0), (0, Cp_in - Cin))) if Cp_in != Cin else x

    TH = int(tile_h) if tile_h is not None else _pick_tile_h(H, d)
    assert H % TH == 0 and TH % d == 0 and H % d == 0, (H, TH, d)
    nH = H // TH
    sub = TH // d                      # halo-slab blocks per row-tile
    dl = _round_up(d, 8)               # left column pad (sublane-aligned writes)
    Wp = dl + W + d

    def core_map(n, i):
        return (n, i, 0, 0)

    def up_map(n, i):                  # d rows just above the tile (clamped)
        return (n, jnp.maximum(i * sub - 1, 0), 0, 0)

    def dn_map(n, i):                  # d rows just below the tile (clamped)
        return (n, jnp.minimum((i + 1) * sub, H // d - 1), 0, 0)

    def w_map(n, i):
        return (0, 0)

    in_specs = [
        pl.BlockSpec((1, TH, W, Cp_in), core_map),
        pl.BlockSpec((1, d, W, Cp_in), up_map),
        pl.BlockSpec((1, d, W, Cp_in), dn_map),
        pl.BlockSpec(kp["w1"].shape, w_map),
        pl.BlockSpec(kp["b1"].shape, w_map),
        pl.BlockSpec(kp["w2"].shape, w_map),
        pl.BlockSpec(kp["b2"].shape, w_map),
        pl.BlockSpec(kp["w3"].shape, w_map),
        pl.BlockSpec(kp["b3"].shape, w_map),
    ]
    out_specs = pl.BlockSpec((1, TH, W, Cp_in), core_map)

    flops = 2 * N * H * W * (Cp_in * Cp_mid + 9 * Cp_mid * Cp_mid + Cp_mid * Cp_in)
    weight_bytes = sum(int(kp[k].size) * kp[k].dtype.itemsize for k in kp)
    bytes_accessed = int(x_p.size * x_p.dtype.itemsize * (1.0 + 2.0 * d / TH)
                         + N * H * W * Cp_in * 4 + weight_bytes)

    out_nhwc = pl.pallas_call(
        functools.partial(_bottleneck_kernel, dilation=d, dl=dl),
        out_shape=jax.ShapeDtypeStruct((N, H, W, Cp_in), x.dtype),
        grid_spec=pltpu.PrefetchScalarGridSpec(
            num_scalar_prefetch=0,
            grid=(N, nH),
            in_specs=in_specs,
            out_specs=out_specs,
            scratch_shapes=[pltpu.VMEM((TH + 2 * d, Wp, Cp_mid), jnp.float32)],
        ),
        compiler_params=pltpu.CompilerParams(
            dimension_semantics=("parallel", "parallel"),
            vmem_limit_bytes=32 * 1024 * 1024,
        ),
        cost_estimate=pl.CostEstimate(flops=flops, transcendentals=0,
                                      bytes_accessed=bytes_accessed),
    )(x_p, x_p, x_p, kp["w1"], kp["b1"], kp["w2"], kp["b2"], kp["w3"], kp["b3"])

    out = out_nhwc[..., :Cin] if Cp_in != Cin else out_nhwc
    return jnp.transpose(out, (0, 3, 1, 2))                     # -> NCHW


# --------------------- parameter construction (glue) -------------------------
def fold_bn(w, b, gamma, beta, mean, var, eps=1e-5):
    """Fold eval-mode BN into a PyTorch-layout conv weight (Cout,Cin,kh,kw)."""
    s = gamma / jnp.sqrt(var + eps)
    w_f = w * s[:, None, None, None]
    b_f = (b - mean) * s + beta
    return w_f, b_f


def make_params(key, in_channels, mid_channels):
    ks = jax.random.split(key, 16)

    def nrm(k, shp, scale=0.1):
        return scale * jax.random.normal(k, shp, jnp.float32)

    raw = {}
    raw["w1"] = nrm(ks[0], (mid_channels, in_channels, 1, 1))
    raw["b1"] = nrm(ks[1], (mid_channels,))
    raw["g1"] = 1.0 + nrm(ks[2], (mid_channels,))
    raw["be1"] = nrm(ks[3], (mid_channels,))
    raw["m1"] = nrm(ks[4], (mid_channels,))
    raw["v1"] = 0.5 + jnp.abs(nrm(ks[5], (mid_channels,), 0.5))
    raw["w2"] = nrm(ks[6], (mid_channels, mid_channels, 3, 3))
    raw["b2"] = nrm(ks[7], (mid_channels,))
    raw["g2"] = 1.0 + nrm(ks[8], (mid_channels,))
    raw["be2"] = nrm(ks[9], (mid_channels,))
    raw["m2"] = nrm(ks[10], (mid_channels,))
    raw["v2"] = 0.5 + jnp.abs(nrm(ks[11], (mid_channels,), 0.5))
    raw["w3"] = nrm(ks[12], (in_channels, mid_channels, 1, 1))
    raw["b3"] = nrm(ks[13], (in_channels,))
    raw["g3"] = 1.0 + nrm(ks[14], (in_channels,))
    raw["be3"] = nrm(ks[15], (in_channels,))
    raw["m3"] = nrm(jax.random.fold_in(key, 100), (in_channels,))
    raw["v3"] = 0.5 + jnp.abs(nrm(jax.random.fold_in(key, 101), (in_channels,), 0.5))

    w1f, b1f = fold_bn(raw["w1"], raw["b1"], raw["g1"], raw["be1"], raw["m1"], raw["v1"])
    w2f, b2f = fold_bn(raw["w2"], raw["b2"], raw["g2"], raw["be2"], raw["m2"], raw["v2"])
    w3f, b3f = fold_bn(raw["w3"], raw["b3"], raw["g3"], raw["be3"], raw["m3"], raw["v3"])

    Cp_in = _round_up(in_channels, 128)
    Cp_mid = _round_up(mid_channels, 128)

    w1 = jnp.zeros((Cp_in, Cp_mid), jnp.float32).at[:in_channels, :mid_channels].set(
        jnp.transpose(w1f[:, :, 0, 0], (1, 0)))
    b1 = jnp.zeros((1, Cp_mid), jnp.float32).at[0, :mid_channels].set(b1f)

    w2t = jnp.transpose(w2f, (2, 3, 1, 0)).reshape(9, mid_channels, mid_channels)
    w2 = jnp.zeros((9, Cp_mid, Cp_mid), jnp.float32).at[:, :mid_channels, :mid_channels].set(w2t)
    w2 = w2.reshape(9 * Cp_mid, Cp_mid)                 # stacked-K layout for one matmul
    b2 = jnp.zeros((1, Cp_mid), jnp.float32).at[0, :mid_channels].set(b2f)

    w3 = jnp.zeros((Cp_mid, Cp_in), jnp.float32).at[:mid_channels, :in_channels].set(
        jnp.transpose(w3f[:, :, 0, 0], (1, 0)))
    b3 = jnp.zeros((1, Cp_in), jnp.float32).at[0, :in_channels].set(b3f)

    kp = {"w1": w1.astype(jnp.bfloat16), "b1": b1,
          "w2": w2.astype(jnp.bfloat16), "b2": b2,
          "w3": w3.astype(jnp.bfloat16), "b3": b3}
    return raw, kp


# --------------------------- pure-JAX references ------------------------------
def ref_forward_exact(x, raw, dilation):
    """Spec semantics: unfused eval-mode BN, f32 convs, NCHW."""
    def conv_bn_relu(h, w, b, g, be, m, v, pad, dil, eps=1e-5):
        y = lax.conv_general_dilated(
            h, w, window_strides=(1, 1), padding=[(pad, pad), (pad, pad)],
            rhs_dilation=(dil, dil),
            dimension_numbers=("NCHW", "OIHW", "NCHW"))
        y = y + b[None, :, None, None]
        y = (y - m[None, :, None, None]) / jnp.sqrt(v[None, :, None, None] + eps)
        y = y * g[None, :, None, None] + be[None, :, None, None]
        return jnp.maximum(y, 0.0)

    h = conv_bn_relu(x, raw["w1"], raw["b1"], raw["g1"], raw["be1"], raw["m1"], raw["v1"], 0, 1)
    h = conv_bn_relu(h, raw["w2"], raw["b2"], raw["g2"], raw["be2"], raw["m2"], raw["v2"],
                     dilation, dilation)
    h = conv_bn_relu(h, raw["w3"], raw["b3"], raw["g3"], raw["be3"], raw["m3"], raw["v3"], 0, 1)
    return h + x


def ref_forward_folded(x_nchw, kp, dilation, in_channels):
    """Same folded bf16-rounded weights the kernel uses, f32 math (tight check)."""
    d = dilation
    x = jnp.transpose(x_nchw, (0, 2, 3, 1)).astype(jnp.float32)
    N, H, W, Cin = x.shape
    Cp_in, Cp_mid = kp["w1"].shape
    xp = jnp.pad(x, ((0, 0), (0, 0), (0, 0), (0, Cp_in - Cin)))
    w1 = kp["w1"].astype(jnp.float32)
    w2 = kp["w2"].astype(jnp.float32).reshape(9, Cp_mid, Cp_mid)
    w3 = kp["w3"].astype(jnp.float32)

    h1 = jnp.maximum(jnp.einsum("nhwc,cm->nhwm", xp, w1) + kp["b1"], 0.0)
    h1p = jnp.pad(h1, ((0, 0), (d, d), (d, d), (0, 0)))
    acc = jnp.zeros((N, H, W, Cp_mid), jnp.float32)
    for ky in range(3):
        for kx in range(3):
            acc = acc + jnp.einsum("nhwc,cm->nhwm",
                                   h1p[:, ky * d:ky * d + H, kx * d:kx * d + W, :],
                                   w2[ky * 3 + kx])
    h2 = jnp.maximum(acc + kp["b2"], 0.0)
    h3 = jnp.maximum(jnp.einsum("nhwc,cm->nhwm", h2, w3) + kp["b3"], 0.0)
    out = (h3 + xp)[..., :in_channels]
    return jnp.transpose(out, (0, 3, 1, 2))


# ---------------------------------- main --------------------------------------
if __name__ == "__main__":
    N, Cin, Cmid, H, W = 2, 64, 32, 16, 16   # small synthetic shapes
    dilation = 2                             # exercise the dilated 3x3 path

    key = jax.random.PRNGKey(0)
    kx_, kw_ = jax.random.split(key)
    x = jax.random.normal(kx_, (N, Cin, H, W), jnp.float32)

    raw, kp = make_params(kw_, Cin, Cmid)

    out = bottleneck_forward(x, kp, dilation, tile_h=8)   # grid (2 batches, 2 row tiles)
    out = jax.block_until_ready(out)
    assert out.shape == (N, Cin, H, W)

    ref_f = jax.block_until_ready(ref_forward_folded(x, kp, dilation, Cin))
    ref_e = jax.block_until_ready(ref_forward_exact(x, raw, dilation))

    err_f = float(jnp.max(jnp.abs(out - ref_f)))
    err_e = float(jnp.max(jnp.abs(out - ref_e)))
    # tight: only bf16 rounding of activations inside the kernel
    assert jnp.allclose(out, ref_f, atol=2e-2, rtol=2e-2), err_f
    # spec sanity: includes bf16 weight rounding vs the f32 unfused-BN reference
    assert jnp.allclose(out, ref_e, atol=1e-1, rtol=1e-1), err_e

    print("KERNEL_OK")
</pallas_src>

<mosaic_0001>
module attributes {stable_mosaic.version = 11 : i64} {
  func.func @_bottleneck_kernel(%arg0: i32, %arg1: i32, %arg2: memref<1x8x16x128xf32, #tpu.memory_space<vmem>>, %arg3: memref<1x2x16x128xf32, #tpu.memory_space<vmem>>, %arg4: memref<1x2x16x128xf32, #tpu.memory_space<vmem>>, %arg5: memref<128x128xbf16, #tpu.memory_space<vmem>>, %arg6: memref<1x128xf32, #tpu.memory_space<vmem>>, %arg7: memref<1152x128xbf16, #tpu.memory_space<vmem>>, %arg8: memref<1x128xf32, #tpu.memory_space<vmem>>, %arg9: memref<128x128xbf16, #tpu.memory_space<vmem>>, %arg10: memref<1x128xf32, #tpu.memory_space<vmem>>, %arg11: memref<1x8x16x128xf32, #tpu.memory_space<vmem>>, %arg12: memref<12x26x128xf32, #tpu.memory_space<vmem>>) attributes {dimension_semantics = [#tpu.dimension_semantics<parallel>, #tpu.dimension_semantics<parallel>], iteration_bounds = array<i64: 2, 2>, scalar_prefetch = 0 : i64, scratch_operands = 1 : i64, tpu.core_type = #tpu.core_type<tc>, window_params = [{transform_indices = @transform_0, window_bounds = array<i64: 1, 8, 16, 128>}, {transform_indices = @transform_1, window_bounds = array<i64: 1, 2, 16, 128>}, {transform_indices = @transform_2, window_bounds = array<i64: 1, 2, 16, 128>}, {pipeline_mode = #tpu.pipeline_mode<synchronous>, transform_indices = @transform_3, window_bounds = array<i64: 128, 128>}, {pipeline_mode = #tpu.pipeline_mode<synchronous>, transform_indices = @transform_4, window_bounds = array<i64: 1, 128>}, {pipeline_mode = #tpu.pipeline_mode<synchronous>, transform_indices = @transform_5, window_bounds = array<i64: 1152, 128>}, {pipeline_mode = #tpu.pipeline_mode<synchronous>, transform_indices = @transform_6, window_bounds = array<i64: 1, 128>}, {pipeline_mode = #tpu.pipeline_mode<synchronous>, transform_indices = @transform_7, window_bounds = array<i64: 128, 128>}, {pipeline_mode = #tpu.pipeline_mode<synchronous>, transform_indices = @transform_8, window_bounds = array<i64: 1, 128>}, {transform_indices = @transform_9, window_bounds = array<i64: 1, 8, 16, 128>}]} {
    %c0 = arith.constant 0 : index
    %c0_0 = arith.constant 0 : index
    %0 = vector.load %arg6[%c0, %c0_0] : memref<1x128xf32, #tpu.memory_space<vmem>>, vector<1x128xf32>
    %c0_1 = arith.constant 0 : index
    %c0_2 = arith.constant 0 : index
    %1 = vector.load %arg8[%c0_1, %c0_2] : memref<1x128xf32, #tpu.memory_space<vmem>>, vector<1x128xf32>
    %c0_3 = arith.constant 0 : index
    %c0_4 = arith.constant 0 : index
    %2 = vector.load %arg10[%c0_3, %c0_4] : memref<1x128xf32, #tpu.memory_space<vmem>>, vector<1x128xf32>
    %c0_5 = arith.constant 0 : index
    %c0_6 = arith.constant 0 : index
    %c0_7 = arith.constant 0 : index
    %c0_8 = arith.constant 0 : index
    %3 = vector.load %arg2[%c0_5, %c0_6, %c0_7, %c0_8] : memref<1x8x16x128xf32, #tpu.memory_space<vmem>>, vector<1x8x16x128xf32>
    %c0_9 = arith.constant 0 : index
    %c0_10 = arith.constant 0 : index
    %c0_11 = arith.constant 0 : index
    %c0_12 = arith.constant 0 : index
    %4 = vector.load %arg3[%c0_9, %c0_10, %c0_11, %c0_12] : memref<1x2x16x128xf32, #tpu.memory_space<vmem>>, vector<1x2x16x128xf32>
    %c0_13 = arith.constant 0 : index
    %c0_14 = arith.constant 0 : index
    %c0_15 = arith.constant 0 : index
    %c0_16 = arith.constant 0 : index
    %5 = vector.load %arg4[%c0_13, %c0_14, %c0_15, %c0_16] : memref<1x2x16x128xf32, #tpu.memory_space<vmem>>, vector<1x2x16x128xf32>
    %6 = tpu.concatenate %4, %3, %5 in 1 : vector<1x2x16x128xf32>, vector<1x8x16x128xf32>, vector<1x2x16x128xf32> -> vector<1x12x16x128xf32>
    %7 = vector.shape_cast %6 : vector<1x12x16x128xf32> to vector<192x128xf32>
    %8 = arith.truncf %7 : vector<192x128xf32> to vector<192x128xbf16>
    %c0_17 = arith.constant 0 : index
    %c0_18 = arith.constant 0 : index
    %9 = vector.load %arg5[%c0_17, %c0_18] : memref<128x128xbf16, #tpu.memory_space<vmem>>, vector<128x128xbf16>
    %cst = arith.constant dense<0.000000e+00> : vector<192x128xf32>
    %10 = tpu.matmul %8, %9, %cst {dimension_numbers = #tpu.dot_dimension_numbers<[1], [0], [0], [1], [0, 0, 1, 1], [], []>} : vector<192x128xbf16>, vector<128x128xbf16>, vector<192x128xf32> -> vector<192x128xf32>
    %11 = vector.broadcast %0 : vector<1x128xf32> to vector<192x128xf32>
    %12 = arith.addf %10, %11 : vector<192x128xf32>
    %cst_19 = arith.constant 0.000000e+00 : f32
    %13 = vector.broadcast %cst_19 : f32 to vector<192x128xf32>
    %14 = arith.maximumf %12, %13 : vector<192x128xf32>
    %15 = vector.shape_cast %14 : vector<192x128xf32> to vector<12x16x128xf32>
    %16 = tpu.iota {dimensions = array<i32: 0>} : vector<12x1x1xi32>
    %c2_i32 = arith.constant 2 : i32
    %17 = vector.broadcast %c2_i32 : i32 to vector<12x1x1xi32>
    %18 = arith.cmpi sge, %16, %17 : vector<12x1x1xi32>
    %c0_i32 = arith.constant 0 : i32
    %19 = arith.cmpi sgt, %arg1, %c0_i32 : i32
    %20 = vector.broadcast %19 : i1 to vector<12x1x1xi1>
    %21 = arith.ori %18, %20 : vector<12x1x1xi1>
    %c10_i32 = arith.constant 10 : i32
    %22 = vector.broadcast %c10_i32 : i32 to vector<12x1x1xi32>
    %23 = arith.cmpi slt, %16, %22 : vector<12x1x1xi32>
    %c1_i32 = arith.constant 1 : i32
    %24 = arith.cmpi slt, %arg1, %c1_i32 : i32
    %25 = vector.broadcast %24 : i1 to vector<12x1x1xi1>
    %26 = arith.ori %23, %25 : vector<12x1x1xi1>
    %27 = arith.andi %21, %26 : vector<12x1x1xi1>
    %cst_20 = arith.constant 0.000000e+00 : f32
    %28 = vector.shape_cast %27 : vector<12x1x1xi1> to vector<12x1x1xi1>
    %29 = vector.broadcast %28 : vector<12x1x1xi1> to vector<12x16x128xi1>
    %30 = vector.broadcast %cst_20 : f32 to vector<12x16x128xf32>
    %31 = arith.select %29, %15, %30 : vector<12x16x128xi1>, vector<12x16x128xf32>
    %cst_21 = arith.constant 0.000000e+00 : f32
    %32 = vector.broadcast %cst_21 : f32 to vector<12x8x128xf32>
    %c0_22 = arith.constant 0 : index
    %c0_23 = arith.constant 0 : index
    %c0_24 = arith.constant 0 : index
    %33 = vector.load %arg12[%c0_22, %c0_23, %c0_24] : memref<12x26x128xf32, #tpu.memory_space<vmem>>, vector<12x8x128xf32>
    tpu.vector_store %arg12[%c0_22, %c0_23, %c0_24], %32 {strides = array<i32>} : memref<12x26x128xf32, #tpu.memory_space<vmem>>, vector<12x8x128xf32>,
    %cst_25 = arith.constant 0.000000e+00 : f32
    %34 = vector.broadcast %cst_25 : f32 to vector<12x2x128xf32>
    %c0_26 = arith.constant 0 : index
    %c24 = arith.constant 24 : index
    %c0_27 = arith.constant 0 : index
    %35 = vector.load %arg12[%c0_26, %c24, %c0_27] : memref<12x26x128xf32, #tpu.memory_space<vmem>>, vector<12x2x128xf32>
    tpu.vector_store %arg12[%c0_26, %c24, %c0_27], %34 {strides = array<i32>} : memref<12x26x128xf32, #tpu.memory_space<vmem>>, vector<12x2x128xf32>,
    %c0_28 = arith.constant 0 : index
    %c8 = arith.constant 8 : index
    %c0_29 = arith.constant 0 : index
    %36 = vector.load %arg12[%c0_28, %c8, %c0_29] : memref<12x26x128xf32, #tpu.memory_space<vmem>>, vector<12x16x128xf32>
    tpu.vector_store %arg12[%c0_28, %c8, %c0_29], %31 {strides = array<i32>} : memref<12x26x128xf32, #tpu.memory_space<vmem>>, vector<12x16x128xf32>,
    %c0_30 = arith.constant 0 : index
    %c6 = arith.constant 6 : index
    %c0_31 = arith.constant 0 : index
    %37 = vector.load %arg12[%c0_30, %c6, %c0_31] : memref<12x26x128xf32, #tpu.memory_space<vmem>>, vector<8x16x128xf32>
    %38 = arith.truncf %37 : vector<8x16x128xf32> to vector<8x16x128xbf16>
    %c0_32 = arith.constant 0 : index
    %c8_33 = arith.constant 8 : index
    %c0_34 = arith.constant 0 : index
    %39 = vector.load %arg12[%c0_32, %c8_33, %c0_34] : memref<12x26x128xf32, #tpu.memory_space<vmem>>, vector<8x16x128xf32>
    %40 = arith.truncf %39 : vector<8x16x128xf32> to vector<8x16x128xbf16>
    %c0_35 = arith.constant 0 : index
    %c10 = arith.constant 10 : index
    %c0_36 = arith.constant 0 : index
    %41 = vector.load %arg12[%c0_35, %c10, %c0_36] : memref<12x26x128xf32, #tpu.memory_space<vmem>>, vector<8x16x128xf32>
    %42 = arith.truncf %41 : vector<8x16x128xf32> to vector<8x16x128xbf16>
    %c2 = arith.constant 2 : index
    %c6_37 = arith.constant 6 : index
    %c0_38 = arith.constant 0 : index
    %43 = vector.load %arg12[%c2, %c6_37, %c0_38] : memref<12x26x128xf32, #tpu.memory_space<vmem>>, vector<8x16x128xf32>
    %44 = arith.truncf %43 : vector<8x16x128xf32> to vector<8x16x128xbf16>
    %c2_39 = arith.constant 2 : index
    %c8_40 = arith.constant 8 : index
    %c0_41 = arith.constant 0 : index
    %45 = vector.load %arg12[%c2_39, %c8_40, %c0_41] : memref<12x26x128xf32, #tpu.memory_space<vmem>>, vector<8x16x128xf32>
    %46 = arith.truncf %45 : vector<8x16x128xf32> to vector<8x16x128xbf16>
    %c2_42 = arith.constant 2 : index
    %c10_43 = arith.constant 10 : index
    %c0_44 = arith.constant 0 : index
    %47 = vector.load %arg12[%c2_42, %c10_43, %c0_44] : memref<12x26x128xf32, #tpu.memory_space<vmem>>, vector<8x16x128xf32>
    %48 = arith.truncf %47 : vector<8x16x128xf32> to vector<8x16x128xbf16>
    %c4 = arith.constant 4 : index
    %c6_45 = arith.constant 6 : index
    %c0_46 = arith.constant 0 : index
    %49 = vector.load %arg12[%c4, %c6_45, %c0_46] : memref<12x26x128xf32, #tpu.memory_space<vmem>>, vector<8x16x128xf32>
    %50 = arith.truncf %49 : vector<8x16x128xf32> to vector<8x16x128xbf16>
    %c4_47 = arith.constant 4 : index
    %c8_48 = arith.constant 8 : index
    %c0_49 = arith.constant 0 : index
    %51 = vector.load %arg12[%c4_47, %c8_48, %c0_49] : memref<12x26x128xf32, #tpu.memory_space<vmem>>, vector<8x16x128xf32>
    %52 = arith.truncf %51 : vector<8x16x128xf32> to vector<8x16x128xbf16>
    %c4_50 = arith.constant 4 : index
    %c10_51 = arith.constant 10 : index
    %c0_52 = arith.constant 0 : index
    %53 = vector.load %arg12[%c4_50, %c10_51, %c0_52] : memref<12x26x128xf32, #tpu.memory_space<vmem>>, vector<8x16x128xf32>
    %54 = arith.truncf %53 : vector<8x16x128xf32> to vector<8x16x128xbf16>
    %55 = tpu.concatenate %38, %40, %42, %44, %46, %48, %50, %52, %54 in 2 : vector<8x16x128xbf16>, vector<8x16x128xbf16>, vector<8x16x128xbf16>, vector<8x16x128xbf16>, vector<8x16x128xbf16>, vector<8x16x128xbf16>, vector<8x16x128xbf16>, vector<8x16x128xbf16>, vector<8x16x128xbf16> -> vector<8x16x1152xbf16>
    %56 = vector.shape_cast %55 : vector<8x16x1152xbf16> to vector<128x1152xbf16>
    %c0_53 = arith.constant 0 : index
    %c0_54 = arith.constant 0 : index
    %57 = vector.load %arg7[%c0_53, %c0_54] : memref<1152x128xbf16, #tpu.memory_space<vmem>>, vector<1152x128xbf16>
    %cst_55 = arith.constant dense<0.000000e+00> : vector<128x128xf32>
    %58 = tpu.matmul %56, %57, %cst_55 {dimension_numbers = #tpu.dot_dimension_numbers<[1], [0], [0], [1], [0, 0, 1, 1], [], []>} : vector<128x1152xbf16>, vector<1152x128xbf16>, vector<128x128xf32> -> vector<128x128xf32>
    %59 = vector.broadcast %1 : vector<1x128xf32> to vector<128x128xf32>
    %60 = arith.addf %58, %59 : vector<128x128xf32>
    %cst_56 = arith.constant 0.000000e+00 : f32
    %61 = vector.broadcast %cst_56 : f32 to vector<128x128xf32>
    %62 = arith.maximumf %60, %61 : vector<128x128xf32>
    %63 = arith.truncf %62 : vector<128x128xf32> to vector<128x128xbf16>
    %c0_57 = arith.constant 0 : index
    %c0_58 = arith.constant 0 : index
    %64 = vector.load %arg9[%c0_57, %c0_58] : memref<128x128xbf16, #tpu.memory_space<vmem>>, vector<128x128xbf16>
    %cst_59 = arith.constant dense<0.000000e+00> : vector<128x128xf32>
    %65 = tpu.matmul %63, %64, %cst_59 {dimension_numbers = #tpu.dot_dimension_numbers<[1], [0], [0], [1], [0, 0, 1, 1], [], []>} : vector<128x128xbf16>, vector<128x128xbf16>, vector<128x128xf32> -> vector<128x128xf32>
    %66 = vector.broadcast %2 : vector<1x128xf32> to vector<128x128xf32>
    %67 = arith.addf %65, %66 : vector<128x128xf32>
    %cst_60 = arith.constant 0.000000e+00 : f32
    %68 = vector.broadcast %cst_60 : f32 to vector<128x128xf32>
    %69 = arith.maximumf %67, %68 : vector<128x128xf32>
    %70 = vector.shape_cast %69 : vector<128x128xf32> to vector<1x8x16x128xf32>
    %71 = arith.addf %70, %3 : vector<1x8x16x128xf32>
    %c0_61 = arith.constant 0 : index
    %c0_62 = arith.constant 0 : index
    %c0_63 = arith.constant 0 : index
    %c0_64 = arith.constant 0 : index
    %72 = vector.load %arg11[%c0_61, %c0_62, %c0_63, %c0_64] : memref<1x8x16x128xf32, #tpu.memory_space<vmem>>, vector<1x8x16x128xf32>
    tpu.vector_store %arg11[%c0_61, %c0_62, %c0_63, %c0_64], %71 {strides = array<i32>} : memref<1x8x16x128xf32, #tpu.memory_space<vmem>>, vector<1x8x16x128xf32>,
    return
  }
  func.func @transform_0(%arg0: i32, %arg1: i32) -> (i32, i32, i32, i32) {
    %c0_i32 = arith.constant 0 : i32
    %c0_i32_0 = arith.constant 0 : i32
    %c0_i32_1 = arith.constant 0 : i32
    return %arg0, %arg1, %c0_i32, %c0_i32_0 : i32, i32, i32, i32
  }
  func.func @transform_1(%arg0: i32, %arg1: i32) -> (i32, i32, i32, i32) {
    %c4_i32 = arith.constant 4 : i32
    %0 = arith.muli %arg1, %c4_i32 : i32
    %c1_i32 = arith.constant 1 : i32
    %1 = arith.subi %0, %c1_i32 : i32
    %c0_i32 = arith.constant 0 : i32
    %2 = arith.maxsi %1, %c0_i32 : i32
    %c0_i32_0 = arith.constant 0 : i32
    %c0_i32_1 = arith.constant 0 : i32
    %c0_i32_2 = arith.constant 0 : i32
    return %arg0, %2, %c0_i32_0, %c0_i32_1 : i32, i32, i32, i32
  }
  func.func @transform_2(%arg0: i32, %arg1: i32) -> (i32, i32, i32, i32) {
    %c1_i32 = arith.constant 1 : i32
    %0 = arith.addi %arg1, %c1_i32 : i32
    %c4_i32 = arith.constant 4 : i32
    %1 = arith.muli %0, %c4_i32 : i32
    %c7_i32 = arith.constant 7 : i32
    %2 = arith.minsi %1, %c7_i32 : i32
    %c0_i32 = arith.constant 0 : i32
    %c0_i32_0 = arith.constant 0 : i32
    %c0_i32_1 = arith.constant 0 : i32
    return %arg0, %2, %c0_i32, %c0_i32_0 : i32, i32, i32, i32
  }
  func.func @transform_3(%arg0: i32, %arg1: i32) -> (i32, i32) {
    %c0_i32 = arith.constant 0 : i32
    %c0_i32_0 = arith.constant 0 : i32
    %c0_i32_1 = arith.constant 0 : i32
    return %c0_i32, %c0_i32_0 : i32, i32
  }
  func.func @transform_4(%arg0: i32, %arg1: i32) -> (i32, i32) {
    %c0_i32 = arith.constant 0 : i32
    %c0_i32_0 = arith.constant 0 : i32
    %c0_i32_1 = arith.constant 0 : i32
    return %c0_i32, %c0_i32_0 : i32, i32
  }
  func.func @transform_5(%arg0: i32, %arg1: i32) -> (i32, i32) {
    %c0_i32 = arith.constant 0 : i32
    %c0_i32_0 = arith.constant 0 : i32
    %c0_i32_1 = arith.constant 0 : i32
    return %c0_i32, %c0_i32_0 : i32, i32
  }
  func.func @transform_6(%arg0: i32, %arg1: i32) -> (i32, i32) {
    %c0_i32 = arith.constant 0 : i32
    %c0_i32_0 = arith.constant 0 : i32
    %c0_i32_1 = arith.constant 0 : i32
    return %c0_i32, %c0_i32_0 : i32, i32
  }
  func.func @transform_7(%arg0: i32, %arg1: i32) -> (i32, i32) {
    %c0_i32 = arith.constant 0 : i32
    %c0_i32_0 = arith.constant 0 : i32
    %c0_i32_1 = arith.constant 0 : i32
    return %c0_i32, %c0_i32_0 : i32, i32
  }
  func.func @transform_8(%arg0: i32, %arg1: i32) -> (i32, i32) {
    %c0_i32 = arith.constant 0 : i32
    %c0_i32_0 = arith.constant 0 : i32
    %c0_i32_1 = arith.constant 0 : i32
    return %c0_i32, %c0_i32_0 : i32, i32
  }
  func.func @transform_9(%arg0: i32, %arg1: i32) -> (i32, i32, i32, i32) {
    %c0_i32 = arith.constant 0 : i32
    %c0_i32_0 = arith.constant 0 : i32
    %c0_i32_1 = arith.constant 0 : i32
    return %arg0, %arg1, %c0_i32, %c0_i32_0 : i32, i32, i32, i32
  }
}

</mosaic_0001>

<llo_original>
// kernel: tpu_custom_call.1
$region0: #{tpu_custom_call.1}
  #allocation0 [shape = 'u32[]', space=smem, size = 0x4, offset = 0x4, fixed_abs, tag = 'smem constant byte address 0x4 - core index']
  #allocation1 [shape = 'u32[144,128]{1,0:T(1,128)}', space=vmem, size = 0x12000, scoped, tag = 'internal scratch']
  #allocation2 [shape = 'f32[12,26,128]{2,1,0:T(8,128)}', space=vmem, size = 0x30000, scoped, tag = 'scratch operand']
  %s0 = inlined_call_operand.hbm [shape: f32[2,16,16,128], index: 0, kind: input, shape index: {}]
  %s1 = inlined_call_operand.hbm [shape: f32[2,16,16,128], index: 1, kind: input, shape index: {}]
  %s2 = inlined_call_operand.hbm [shape: f32[2,16,16,128], index: 2, kind: input, shape index: {}]
  %s3 = inlined_call_operand.hbm [shape: bf16[128,128], index: 3, kind: input, shape index: {}]
  %s4 = inlined_call_operand.vmem [shape: f32[1,128], index: 4, kind: input, shape index: {}]
  %s5 = inlined_call_operand.hbm [shape: bf16[1152,128], index: 5, kind: input, shape index: {}]
  %s6 = inlined_call_operand.vmem [shape: f32[1,128], index: 6, kind: input, shape index: {}]
  %s7 = inlined_call_operand.hbm [shape: bf16[128,128], index: 7, kind: input, shape index: {}]
  %s8 = inlined_call_operand.vmem [shape: f32[1,128], index: 8, kind: input, shape index: {}]
  %s9 = inlined_call_operand.hbm [shape: f32[2,16,16,128], index: 9, kind: output, shape index: {}]
  %s10 = sld [smem:[#allocation0]]
  $region93: #{tpu_custom_call.1} parent=0
    _
  %s12 = ssub.s32 1, %s10
  %s13 = scalar_select 0, %s12, %s10
  $region1: #{tpu_custom_call.1} parent=0
    #allocation3 [shape = 'u8[131072]{0}', space=vmem, size = 0x20000, scoped, tag = 'input window, operand 0']
    #allocation4 [shape = 's32[2]{0}', space=sflag, size = 0x8, scoped, tag = 'scoped memory for tpu_custom_call.1']
    #allocation5 [shape = 's32[2]{0}', space=sflag, size = 0x8, scoped, tag = 'scoped memory for tpu_custom_call.1']
    #allocation6 [shape = 'u8[32768]{0}', space=vmem, size = 0x8000, scoped, tag = 'input window, operand 1']
    #allocation7 [shape = 's32[2]{0}', space=sflag, size = 0x8, scoped, tag = 'scoped memory for tpu_custom_call.1']
    #allocation8 [shape = 'u8[32768]{0}', space=vmem, size = 0x8000, scoped, tag = 'input window, operand 2']
    #allocation9 [shape = 'u8[32768]{0}', space=vmem, size = 0x8000, scoped, tag = 'input window, operand 3, single buffered']
    #allocation10 [shape = 's32[1]{0}', space=sflag, size = 0x4, scoped, tag = 'scoped memory for tpu_custom_call.1']
    #allocation11 [shape = 'u8[294912]{0}', space=vmem, size = 0x48000, scoped, tag = 'input window, operand 5, single buffered']
    #allocation12 [shape = 'u8[32768]{0}', space=vmem, size = 0x8000, scoped, tag = 'input window, operand 7, single buffered']
    #allocation13 [shape = 's32[1]{0}', space=sflag, size = 0x4, scoped, tag = 'scoped memory for tpu_custom_call.1']
    #allocation14 [shape = 'u8[131072]{0}', space=vmem, size = 0x20000, scoped, tag = 'output window, operand 0']
    %14 = vsyncpa [#allocation4], 0
    %s15 = scalar_lea.sflag [#allocation4], 1
    %16 = vsyncpa %s15, 0
    %17 = vsyncpa [#allocation7], 0
    %s18 = scalar_lea.sflag [#allocation7], 1
    %19 = vsyncpa %s18, 0
    %20 = vsyncpa [#allocation10], 0
    %21 = vsyncpa [#allocation13], 0
    %22 = vsyncpa [#allocation5], 0
    %s23 = scalar_lea.sflag [#allocation5], 1
    %24 = vsyncpa %s23, 0
    loop: start=0, step=1, limit=6
    $region2: #{tpu_custom_call.1} parent=1 // loop_pre_header
      _
    $region3: #{tpu_custom_call.1} parent=1 // loop_header
      %s26 = sphi 0, %s30
      %p27 = scmp.ge.s32.totalorder %s26, 6
      %s33 = sphi 0, %s45
      %s34 = sphi 0, %s41
      %s35 = sphi 0, %s33
      %s36 = sphi 0, %s34
      %s37 = sphi 0, %s35
      %s38 = sphi 0, %s36
      %s50 = sphi 0, %s52
      %s53 = sphi 0, %s50
      %s54 = sphi 0, %s53
      %s70 = sphi 0, %s54
      %s86 = sphi 0, %s88
      %s89 = sphi 0, %s86
      %s90 = sphi 0, %s89
      %s106 = sphi 0, %s90
      %s122 = sphi 0, %s124
      %s125 = sphi 0, %s122
      %s126 = sphi 0, %s125
      %s142 = sphi 0, %s126
      %s146 = sphi 0, %s146
      %s148 = sphi 0, %s146
      %s149 = sphi 0, %s148
      %s163 = sphi 0, %s149
      %s167 = sphi 0, %s167
      %s169 = sphi 0, %s167
      %s170 = sphi 0, %s169
      %s184 = sphi 0, %s170
      %s188 = sphi 0, %s188
      %s190 = sphi 0, %s188
      %s191 = sphi 0, %s190
      %s205 = sphi 0, %s191
      %s209 = sphi 0, %s209
      %s211 = sphi 0, %s209
      %s212 = sphi 0, %s211
      %s226 = sphi 0, %s212
      %s230 = sphi 0, %s230
      %s232 = sphi 0, %s230
      %s233 = sphi 0, %s232
      %s247 = sphi 0, %s233
      %s251 = sphi 0, %s251
      %s253 = sphi 0, %s251
      %s254 = sphi 0, %s253
      %s268 = sphi 0, %s254
      %s276 = sphi 0, %s278
      %s279 = sphi 0, %s276
      %s280 = sphi 0, %s279
      %s296 = sphi 0, %s280
    $region4: #{tpu_custom_call.1} parent=1 // loop_header_branch
      %29 = sbr.rel (%p27) target = $region8
    $region5: #{tpu_custom_call.1} parent=1 // loop_body
      %s31 = ssub.s32 %s26, 1
      %s32 = ssub.s32 %s26, 2
      %s39 = sadd.s32 1, %s34
      %p40 = scmp.ge.s32.totalorder %s39, 2
      %s41 = scalar_select %p40, 0, %s39
      %s42 = sadd.s32 1, %s33
      %s43 = scalar_select %p40, %s42, %s33
      %p44 = scmp.ge.s32.totalorder %s43, 2
      %s45 = scalar_select %p44, 0, %s43
      %s46 = ssub.s32 %s33, %s45
      %s47 = ssub.s32 %s34, %s41
      %s48 = sor.u32 %s46, %s47
      %p49 = scmp.eq.s32.totalorder %s48, 0
      %s51 = sadd.s32 %s50, 1
      %s52 = scalar_select %p49, %s50, %s51
      %p55 = pneg %p49
      %p56 = scmp.eq.s32.totalorder %s26, 3
      %p57 = por %p55, %p56
      %p58 = scmp.ne.s32.totalorder %s50, %s53
      %p59 = scmp.eq.s32.totalorder %s26, 0
      %p60 = por %p58, %p59
      %p61 = scmp.ne.s32.totalorder %s50, %s53
      %p62 = scmp.eq.s32.totalorder %s31, 3
      %p63 = por %p61, %p62
      %p64 = scmp.ne.s32.totalorder %s53, %s54
      %p65 = scmp.eq.s32.totalorder %s31, 0
      %p66 = por %p64, %p65
      %p67 = scmp.ne.s32.totalorder %s53, %s54
      %p68 = scmp.eq.s32.totalorder %s32, 3
      %p69 = por %p67, %p68
      %p71 = scmp.ne.s32.totalorder %s54, %s70
      %p72 = scmp.eq.s32.totalorder %s32, 0
      %p73 = por %p71, %p72
      %s74 = smul.u32 %s34, 4
      %s75 = ssub.s32 %s74, 1
      %p76 = scmp.gt.s32.totalorder %s75, 0
      %s77 = scalar_select %p76, %s75, 0
      %s78 = smul.u32 %s41, 4
      %s79 = ssub.s32 %s78, 1
      %p80 = scmp.gt.s32.totalorder %s79, 0
      %s81 = scalar_select %p80, %s79, 0
      %s82 = ssub.s32 %s33, %s45
      %s83 = ssub.s32 %s77, %s81
      %s84 = sor.u32 %s82, %s83
      %p85 = scmp.eq.s32.totalorder %s84, 0
      %s87 = sadd.s32 %s86, 1
      %s88 = scalar_select %p85, %s86, %s87
      %p91 = pneg %p85
      %p92 = scmp.eq.s32.totalorder %s26, 3
      %p93 = por %p91, %p92
      %p94 = scmp.ne.s32.totalorder %s86, %s89
      %p95 = scmp.eq.s32.totalorder %s26, 0
      %p96 = por %p94, %p95
      %p97 = scmp.ne.s32.totalorder %s86, %s89
      %p98 = scmp.eq.s32.totalorder %s31, 3
      %p99 = por %p97, %p98
      %p100 = scmp.ne.s32.totalorder %s89, %s90
      %p101 = scmp.eq.s32.totalorder %s31, 0
      %p102 = por %p100, %p101
      %p103 = scmp.ne.s32.totalorder %s89, %s90
      %p104 = scmp.eq.s32.totalorder %s32, 3
      %p105 = por %p103, %p104
      %p107 = scmp.ne.s32.totalorder %s90, %s106
      %p108 = scmp.eq.s32.totalorder %s32, 0
      %p109 = por %p107, %p108
      %s110 = sadd.s32 %s34, 1
      %s111 = smul.u32 %s110, 4
      %p112 = scmp.lt.s32.totalorder %s111, 7
      %s113 = scalar_select %p112, %s111, 7
      %s114 = sadd.s32 %s41, 1
      %s115 = smul.u32 %s114, 4
      %p116 = scmp.lt.s32.totalorder %s115, 7
      %s117 = scalar_select %p116, %s115, 7
      %s118 = ssub.s32 %s33, %s45
      %s119 = ssub.s32 %s113, %s117
      %s120 = sor.u32 %s118, %s119
      %p121 = scmp.eq.s32.totalorder %s120, 0
      %s123 = sadd.s32 %s122, 1
      %s124 = scalar_select %p121, %s122, %s123
      %p127 = pneg %p121
      %p128 = scmp.eq.s32.totalorder %s26, 3
      %p129 = por %p127, %p128
      %p130 = scmp.ne.s32.totalorder %s122, %s125
      %p131 = scmp.eq.s32.totalorder %s26, 0
      %p132 = por %p130, %p131
      %p133 = scmp.ne.s32.totalorder %s122, %s125
      %p134 = scmp.eq.s32.totalorder %s31, 3
      %p135 = por %p133, %p134
      %p136 = scmp.ne.s32.totalorder %s125, %s126
      %p137 = scmp.eq.s32.totalorder %s31, 0
      %p138 = por %p136, %p137
      %p139 = scmp.ne.s32.totalorder %s125, %s126
      %p140 = scmp.eq.s32.totalorder %s32, 3
      %p141 = por %p139, %p140
      %p143 = scmp.ne.s32.totalorder %s126, %s142
      %p144 = scmp.eq.s32.totalorder %s32, 0
      %p145 = por %p143, %p144
      %s147 = sadd.s32 %s146, 1
      %p150 = scmp.eq.s32.totalorder %s26, 3
      %p151 = scmp.ne.s32.totalorder %s146, %s148
      %p152 = scmp.eq.s32.totalorder %s26, 0
      %p153 = por %p151, %p152
      %p154 = scmp.ne.s32.totalorder %s146, %s148
      %p155 = scmp.eq.s32.totalorder %s31, 3
      %p156 = por %p154, %p155
      %p157 = scmp.ne.s32.totalorder %s148, %s149
      %p158 = scmp.eq.s32.totalorder %s31, 0
      %p159 = por %p157, %p158
      %p160 = scmp.ne.s32.totalorder %s148, %s149
      %p161 = scmp.eq.s32.totalorder %s32, 3
      %p162 = por %p160, %p161
      %p164 = scmp.ne.s32.totalorder %s149, %s163
      %p165 = scmp.eq.s32.totalorder %s32, 0
      %p166 = por %p164, %p165
      %s168 = sadd.s32 %s167, 1
      %p171 = scmp.eq.s32.totalorder %s26, 3
      %p172 = scmp.ne.s32.totalorder %s167, %s169
      %p173 = scmp.eq.s32.totalorder %s26, 0
      %p174 = por %p172, %p173
      %p175 = scmp.ne.s32.totalorder %s167, %s169
      %p176 = scmp.eq.s32.totalorder %s31, 3
      %p177 = por %p175, %p176
      %p178 = scmp.ne.s32.totalorder %s169, %s170
      %p179 = scmp.eq.s32.totalorder %s31, 0
      %p180 = por %p178, %p179
      %p181 = scmp.ne.s32.totalorder %s169, %s170
      %p182 = scmp.eq.s32.totalorder %s32, 3
      %p183 = por %p181, %p182
      %p185 = scmp.ne.s32.totalorder %s170, %s184
      %p186 = scmp.eq.s32.totalorder %s32, 0
      %p187 = por %p185, %p186
      %s189 = sadd.s32 %s188, 1
      %p192 = scmp.eq.s32.totalorder %s26, 3
      %p193 = scmp.ne.s32.totalorder %s188, %s190
      %p194 = scmp.eq.s32.totalorder %s26, 0
      %p195 = por %p193, %p194
      %p196 = scmp.ne.s32.totalorder %s188, %s190
      %p197 = scmp.eq.s32.totalorder %s31, 3
      %p198 = por %p196, %p197
      %p199 = scmp.ne.s32.totalorder %s190, %s191
      %p200 = scmp.eq.s32.totalorder %s31, 0
      %p201 = por %p199, %p200
      %p202 = scmp.ne.s32.totalorder %s190, %s191
      %p203 = scmp.eq.s32.totalorder %s32, 3
      %p204 = por %p202, %p203
      %p206 = scmp.ne.s32.totalorder %s191, %s205
      %p207 = scmp.eq.s32.totalorder %s32, 0
      %p208 = por %p206, %p207
      %s210 = sadd.s32 %s209, 1
      %p213 = scmp.eq.s32.totalorder %s26, 3
      %p214 = scmp.ne.s32.totalorder %s209, %s211
      %p215 = scmp.eq.s32.totalorder %s26, 0
      %p216 = por %p214, %p215
      %p217 = scmp.ne.s32.totalorder %s209, %s211
      %p218 = scmp.eq.s32.totalorder %s31, 3
      %p219 = por %p217, %p218
      %p220 = scmp.ne.s32.totalorder %s211, %s212
      %p221 = scmp.eq.s32.totalorder %s31, 0
      %p222 = por %p220, %p221
      %p223 = scmp.ne.s32.totalorder %s211, %s212
      %p224 = scmp.eq.s32.totalorder %s32, 3
      %p225 = por %p223, %p224
      %p227 = scmp.ne.s32.totalorder %s212, %s226
      %p228 = scmp.eq.s32.totalorder %s32, 0
      %p229 = por %p227, %p228
      %s231 = sadd.s32 %s230, 1
      %p234 = scmp.eq.s32.totalorder %s26, 3
      %p235 = scmp.ne.s32.totalorder %s230, %s232
      %p236 = scmp.eq.s32.totalorder %s26, 0
      %p237 = por %p235, %p236
      %p238 = scmp.ne.s32.totalorder %s230, %s232
      %p239 = scmp.eq.s32.totalorder %s31, 3
      %p240 = por %p238, %p239
      %p241 = scmp.ne.s32.totalorder %s232, %s233
      %p242 = scmp.eq.s32.totalorder %s31, 0
      %p243 = por %p241, %p242
      %p244 = scmp.ne.s32.totalorder %s232, %s233
      %p245 = scmp.eq.s32.totalorder %s32, 3
      %p246 = por %p244, %p245
      %p248 = scmp.ne.s32.totalorder %s233, %s247
      %p249 = scmp.eq.s32.totalorder %s32, 0
      %p250 = por %p248, %p249
      %s252 = sadd.s32 %s251, 1
      %p255 = scmp.eq.s32.totalorder %s26, 3
      %p256 = scmp.ne.s32.totalorder %s251, %s253
      %p257 = scmp.eq.s32.totalorder %s26, 0
      %p258 = por %p256, %p257
      %p259 = scmp.ne.s32.totalorder %s251, %s253
      %p260 = scmp.eq.s32.totalorder %s31, 3
      %p261 = por %p259, %p260
      %p262 = scmp.ne.s32.totalorder %s253, %s254
      %p263 = scmp.eq.s32.totalorder %s31, 0
      %p264 = por %p262, %p263
      %p265 = scmp.ne.s32.totalorder %s253, %s254
      %p266 = scmp.eq.s32.totalorder %s32, 3
      %p267 = por %p265, %p266
      %p269 = scmp.ne.s32.totalorder %s254, %s268
      %p270 = scmp.eq.s32.totalorder %s32, 0
      %p271 = por %p269, %p270
      %s272 = ssub.s32 %s33, %s45
      %s273 = ssub.s32 %s34, %s41
      %s274 = sor.u32 %s272, %s273
      %p275 = scmp.eq.s32.totalorder %s274, 0
      %s277 = sadd.s32 %s276, 1
      %s278 = scalar_select %p275, %s276, %s277
      %p281 = pneg %p275
      %p282 = scmp.eq.s32.totalorder %s26, 3
      %p283 = por %p281, %p282
      %p284 = scmp.ne.s32.totalorder %s276, %s279
      %p285 = scmp.eq.s32.totalorder %s26, 0
      %p286 = por %p284, %p285
      %p287 = scmp.ne.s32.totalorder %s276, %s279
      %p288 = scmp.eq.s32.totalorder %s31, 3
      %p289 = por %p287, %p288
      %p290 = scmp.ne.s32.totalorder %s279, %s280
      %p291 = scmp.eq.s32.totalorder %s31, 0
      %p292 = por %p290, %p291
      %p293 = scmp.ne.s32.totalorder %s279, %s280
      %p294 = scmp.eq.s32.totalorder %s32, 3
      %p295 = por %p293, %p294
      %p297 = scmp.ne.s32.totalorder %s280, %s296
      %p298 = scmp.eq.s32.totalorder %s32, 0
      %p299 = por %p297, %p298
      %p300 = scmp.le.s32.totalorder 1, %s26
      %p301 = scmp.lt.s32.totalorder %s26, 5
      %p302 = pnand %p300, %p301
      %p303 = pneg %p302
      // Predicated region
      $region9: #{tpu_custom_call.1} parent=5 // pred_check
        _
      $region10: #{tpu_custom_call.1} parent=5 // pred_check_branch
        %305 = sbr.rel (%p302) target = $region12
      $region11: #{tpu_custom_call.1} parent=5 // pred_region
        %s306 = ssub.s32 %s26, 1
        // Predicated region
        $region13: #{tpu_custom_call.1} parent=11 // pred_check
          %p307 = pneg %p159
        $region14: #{tpu_custom_call.1} parent=11 // pred_check_branch
          %309 = sbr.rel (%p307) target = $region16
        $region15: #{tpu_custom_call.1} parent=11 // pred_region
          %s311 = ssub.s32 1024, 1024
          %312 = vsyncadd [#allocation10], %s311
          %s313 = sshll.u32 [#allocation9], 4
          %s314 = int_to_ptr.vmem [resolvable:$true] %s313
          %319 = dma.hbm_to_vmem [thread:$0]  %s3, 1024, %s314, [#allocation10], 64, 64, 4
        $region16: #{tpu_custom_call.1} parent=11 // pred_fallthru
          _
        // Predicated region
        $region17: #{tpu_custom_call.1} parent=11 // pred_check
          %p320 = pneg %p180
        $region18: #{tpu_custom_call.1} parent=11 // pred_check_branch
          %322 = sbr.rel (%p320) target = $region20
        $region19: #{tpu_custom_call.1} parent=11 // pred_region
          _
        $region20: #{tpu_custom_call.1} parent=11 // pred_fallthru
          _
        // Predicated region
        $region21: #{tpu_custom_call.1} parent=11 // pred_check
          %p323 = pneg %p201
        $region22: #{tpu_custom_call.1} parent=11 // pred_check_branch
          %325 = sbr.rel (%p323) target = $region24
        $region23: #{tpu_custom_call.1} parent=11 // pred_region
          %s327 = ssub.s32 9216, 9216
          %328 = vsyncadd [#allocation10], %s327
          %s329 = sshll.u32 [#allocation11], 4
          %s330 = int_to_ptr.vmem [resolvable:$true] %s329
          %335 = dma.hbm_to_vmem [thread:$0]  %s5, 9216, %s330, [#allocation10], 64, 64, 4
        $region24: #{tpu_custom_call.1} parent=11 // pred_fallthru
          _
        // Predicated region
        $region25: #{tpu_custom_call.1} parent=11 // pred_check
          %p336 = pneg %p222
        $region26: #{tpu_custom_call.1} parent=11 // pred_check_branch
          %338 = sbr.rel (%p336) target = $region28
        $region27: #{tpu_custom_call.1} parent=11 // pred_region
          _
        $region28: #{tpu_custom_call.1} parent=11 // pred_fallthru
          _
        // Predicated region
        $region29: #{tpu_custom_call.1} parent=11 // pred_check
          %p339 = pneg %p243
        $region30: #{tpu_custom_call.1} parent=11 // pred_check_branch
          %341 = sbr.rel (%p339) target = $region32
        $region31: #{tpu_custom_call.1} parent=11 // pred_region
          %s343 = ssub.s32 1024, 1024
          %344 = vsyncadd [#allocation13], %s343
          %s345 = sshll.u32 [#allocation12], 4
          %s346 = int_to_ptr.vmem [resolvable:$true] %s345
          %351 = dma.hbm_to_vmem [thread:$0]  %s7, 1024, %s346, [#allocation13], 64, 64, 4
        $region32: #{tpu_custom_call.1} parent=11 // pred_fallthru
          _
        // Predicated region
        $region33: #{tpu_custom_call.1} parent=11 // pred_check
          %p352 = pneg %p264
        $region34: #{tpu_custom_call.1} parent=11 // pred_check_branch
          %354 = sbr.rel (%p352) target = $region36
        $region35: #{tpu_custom_call.1} parent=11 // pred_region
          _
        $region36: #{tpu_custom_call.1} parent=11 // pred_fallthru
          _
      $region12: #{tpu_custom_call.1} parent=5 // pred_fallthru
        _
      %p355 = scmp.lt.s32.totalorder %s26, 4
      // Predicated region
      $region37: #{tpu_custom_call.1} parent=5 // pred_check
        %p356 = pneg %p355
      $region38: #{tpu_custom_call.1} parent=5 // pred_check_branch
        %358 = sbr.rel (%p356) target = $region40
      $region39: #{tpu_custom_call.1} parent=5 // pred_region
        // Predicated region
        $region41: #{tpu_custom_call.1} parent=39 // pred_check
          %p359 = pneg %p60
        $region42: #{tpu_custom_call.1} parent=39 // pred_check_branch
          %361 = sbr.rel (%p359) target = $region44
        $region43: #{tpu_custom_call.1} parent=39 // pred_region
          %s362 = sand.u32 %s50, 1
          %s363 = scalar_lea.sflag [#allocation4], %s362
          %s364 = sand.u32 %s50, 1
          %s365 = smul.addr %s364, 128
          %s366 = scalar_lea.vmem [#allocation3], %s365
          %s367 = smul.u32 8, %s34
          %s369 = ssub.s32 2048, 2048
          %370 = vsyncadd %s363, %s369
          %s371 = smul.addr %s367, 2
          %s372 = smul.addr %s33, 32
          %s373 = sadd.s32 %s371, %s372
          %s374 = smul.addr %s373, 128
          %s375 = scalar_lea.hbm %s0, %s374
          %s376 = sshll.u32 %s366, 4
          %s377 = int_to_ptr.vmem [resolvable:$true] %s376
          %382 = dma.hbm_to_vmem [thread:$0]  %s375, 2048, %s377, %s363, 128, 128, 8
        $region44: #{tpu_custom_call.1} parent=39 // pred_fallthru
          _
        // Predicated region
        $region45: #{tpu_custom_call.1} parent=39 // pred_check
          %p383 = pneg %p96
        $region46: #{tpu_custom_call.1} parent=39 // pred_check_branch
          %385 = sbr.rel (%p383) target = $region48
        $region47: #{tpu_custom_call.1} parent=39 // pred_region
          %s386 = sand.u32 %s26, 1
          %s387 = scalar_lea.sflag [#allocation7], %s386
          %s388 = sand.u32 %s86, 1
          %s389 = smul.addr %s388, 32
          %s390 = scalar_lea.vmem [#allocation6], %s389
          %s391 = smul.u32 %s34, 4
          %s392 = ssub.s32 %s391, 1
          %p393 = scmp.gt.s32.totalorder %s392, 0
          %s394 = scalar_select %p393, %s392, 0
          %s395 = smul.u32 2, %s394
          %s397 = ssub.s32 512, 512
          %398 = vsyncadd %s387, %s397
          %s399 = smul.addr %s395, 2
          %s400 = smul.addr %s33, 32
          %s401 = sadd.s32 %s399, %s400
          %s402 = smul.addr %s401, 128
          %s403 = scalar_lea.hbm %s1, %s402
          %s404 = sshll.u32 %s390, 4
          %s405 = int_to_ptr.vmem [resolvable:$true] %s404
          %410 = dma.hbm_to_vmem [thread:$0]  %s403, 512, %s405, %s387, 128, 128, 8
        $region48: #{tpu_custom_call.1} parent=39 // pred_fallthru
          _
        // Predicated region
        $region49: #{tpu_custom_call.1} parent=39 // pred_check
          %p411 = pneg %p132
        $region50: #{tpu_custom_call.1} parent=39 // pred_check_branch
          %413 = sbr.rel (%p411) target = $region52
        $region51: #{tpu_custom_call.1} parent=39 // pred_region
          %s414 = sand.u32 %s26, 1
          %s415 = scalar_lea.sflag [#allocation7], %s414
          %s416 = sand.u32 %s122, 1
          %s417 = smul.addr %s416, 32
          %s418 = scalar_lea.vmem [#allocation8], %s417
          %s419 = sadd.s32 %s34, 1
          %s420 = smul.u32 %s419, 4
          %p421 = scmp.lt.s32.totalorder %s420, 7
          %s422 = scalar_select %p421, %s420, 7
          %s423 = smul.u32 2, %s422
          %s425 = ssub.s32 512, 512
          %426 = vsyncadd %s415, %s425
          %s427 = smul.addr %s423, 2
          %s428 = smul.addr %s33, 32
          %s429 = sadd.s32 %s427, %s428
          %s430 = smul.addr %s429, 128
          %s431 = scalar_lea.hbm %s2, %s430
          %s432 = sshll.u32 %s418, 4
          %s433 = int_to_ptr.vmem [resolvable:$true] %s432
          %438 = dma.hbm_to_vmem [thread:$0]  %s431, 512, %s433, %s415, 128, 128, 8
        $region52: #{tpu_custom_call.1} parent=39 // pred_fallthru
          _
      $region40: #{tpu_custom_call.1} parent=5 // pred_fallthru
        _
      %p439 = scmp.le.s32.totalorder 1, %s26
      %p440 = scmp.lt.s32.totalorder %s26, 5
      %p441 = pnand %p439, %p440
      %p442 = pneg %p441
      // Predicated region
      $region53: #{tpu_custom_call.1} parent=5 // pred_check
        _
      $region54: #{tpu_custom_call.1} parent=5 // pred_check_branch
        %444 = sbr.rel (%p441) target = $region56
      $region55: #{tpu_custom_call.1} parent=5 // pred_region
        %s445 = ssub.s32 %s26, 1
        %s446 = sand.u32 %s53, 1
        %s447 = scalar_lea.sflag [#allocation4], %s446
        %s448 = sand.u32 %s53, 1
        %s449 = smul.addr %s448, 128
        %s450 = scalar_lea.vmem [#allocation3], %s449
        // Predicated region
        $region57: #{tpu_custom_call.1} parent=55 // pred_check
          %p451 = pneg %p66
        $region58: #{tpu_custom_call.1} parent=55 // pred_check_branch
          %453 = sbr.rel (%p451) target = $region60
        $region59: #{tpu_custom_call.1} parent=55 // pred_region
          %454 = dma.done %s447, 2048
        $region60: #{tpu_custom_call.1} parent=55 // pred_fallthru
          _
        %s455 = sand.u32 %s31, 1
        %s456 = scalar_lea.sflag [#allocation7], %s455
        %s457 = sand.u32 %s89, 1
        %s458 = smul.addr %s457, 32
        %s459 = scalar_lea.vmem [#allocation6], %s458
        // Predicated region
        $region61: #{tpu_custom_call.1} parent=55 // pred_check
          %p460 = pneg %p102
        $region62: #{tpu_custom_call.1} parent=55 // pred_check_branch
          %462 = sbr.rel (%p460) target = $region64
        $region63: #{tpu_custom_call.1} parent=55 // pred_region
          %463 = dma.done %s456, 512
        $region64: #{tpu_custom_call.1} parent=55 // pred_fallthru
          _
        %s464 = sand.u32 %s31, 1
        %s465 = scalar_lea.sflag [#allocation7], %s464
        %s466 = sand.u32 %s125, 1
        %s467 = smul.addr %s466, 32
        %s468 = scalar_lea.vmem [#allocation8], %s467
        // Predicated region
        $region65: #{tpu_custom_call.1} parent=55 // pred_check
          %p469 = pneg %p138
        $region66: #{tpu_custom_call.1} parent=55 // pred_check_branch
          %471 = sbr.rel (%p469) target = $region68
        $region67: #{tpu_custom_call.1} parent=55 // pred_region
          %472 = dma.done %s465, 512
        $region68: #{tpu_custom_call.1} parent=55 // pred_fallthru
          _
        // Predicated region
        $region69: #{tpu_custom_call.1} parent=55 // pred_check
          %p473 = pneg %p159
        $region70: #{tpu_custom_call.1} parent=55 // pred_check_branch
          %475 = sbr.rel (%p473) target = $region72
        $region71: #{tpu_custom_call.1} parent=55 // pred_region
          %476 = dma.done [#allocation10], 1024
        $region72: #{tpu_custom_call.1} parent=55 // pred_fallthru
          _
        // Predicated region
        $region73: #{tpu_custom_call.1} parent=55 // pred_check
          %p477 = pneg %p201
        $region74: #{tpu_custom_call.1} parent=55 // pred_check_branch
          %479 = sbr.rel (%p477) target = $region76
        $region75: #{tpu_custom_call.1} parent=55 // pred_region
          %480 = dma.done [#allocation10], 9216
        $region76: #{tpu_custom_call.1} parent=55 // pred_fallthru
          _
        // Predicated region
        $region77: #{tpu_custom_call.1} parent=55 // pred_check
          %p481 = pneg %p243
        $region78: #{tpu_custom_call.1} parent=55 // pred_check_branch
          %483 = sbr.rel (%p481) target = $region80
        $region79: #{tpu_custom_call.1} parent=55 // pred_region
          %484 = dma.done [#allocation13], 1024
        $region80: #{tpu_custom_call.1} parent=55 // pred_fallthru
          _
        %s485 = sand.u32 %s53, 1
        %s486 = scalar_lea.sflag [#allocation4], %s485
        %s487 = sand.u32 %s53, 1
        %s488 = smul.addr %s487, 128
        %s489 = scalar_lea.vmem [#allocation3], %s488
        %p490 = pneg %p66
        %p491 = pneg %p63
        %s492 = sand.u32 %s31, 1
        %s493 = scalar_lea.sflag [#allocation7], %s492
        %s494 = sand.u32 %s89, 1
        %s495 = smul.addr %s494, 32
        %s496 = scalar_lea.vmem [#allocation6], %s495
        %p497 = pneg %p102
        %p498 = pneg %p99
        %s499 = sand.u32 %s31, 1
        %s500 = scalar_lea.sflag [#allocation7], %s499
        %s501 = sand.u32 %s125, 1
        %s502 = smul.addr %s501, 32
        %s503 = scalar_lea.vmem [#allocation8], %s502
        %p504 = pneg %p138
        %p505 = pneg %p135
        %p506 = pneg %p159
        %p507 = pneg %p156
        %p508 = pneg %p180
        %p509 = pneg %p177
        %p510 = pneg %p201
        %p511 = pneg %p198
        %p512 = pneg %p222
        %p513 = pneg %p219
        %p514 = pneg %p243
        %p515 = pneg %p240
        %p516 = pneg %p264
        %p517 = pneg %p261
        %p518 = pneg %p292
        %p519 = pneg %p289
        %s520 = sand.u32 %s279, 1
        %s521 = scalar_lea.sflag [#allocation5], %s520
        %s522 = sand.u32 %s279, 1
        %s523 = smul.addr %s522, 128
        %s524 = scalar_lea.vmem [#allocation14], %s523
        %s525 = smul.u32 8, %s36
        %s526 = smul.u32 %s36, 4
        %s527 = ssub.s32 %s526, 1
        %p528 = scmp.gt.s32.totalorder %s527, 0
        %s529 = scalar_select %p528, %s527, 0
        %s530 = smul.u32 2, %s529
        %s531 = sadd.s32 %s36, 1
        %s532 = smul.u32 %s531, 4
        %p533 = scmp.lt.s32.totalorder %s532, 7
        %s534 = scalar_select %p533, %s532, 7
        %s535 = smul.u32 2, %s534
        %s536 = smul.u32 8, %s36
        %v538 = vld [vmem:[%s4] sm:$0x1]
        %v539 = vld [vmem:[%s6] sm:$0x1]
        %v540 = vld [vmem:[%s8] sm:$0x1]
        %v541 = vld [vmem:[%s450] sm:$0xff]
        %v542 = vld [vmem:[%s450 + $0x8] sm:$0xff]
        %v543 = vld [vmem:[%s450 + $0x10] sm:$0xff]
        %v544 = vld [vmem:[%s450 + $0x18] sm:$0xff]
        %v545 = vld [vmem:[%s450 + $0x20] sm:$0xff]
        %v546 = vld [vmem:[%s450 + $0x28] sm:$0xff]
        %v547 = vld [vmem:[%s450 + $0x30] sm:$0xff]
        %v548 = vld [vmem:[%s450 + $0x38] sm:$0xff]
        %v549 = vld [vmem:[%s450 + $0x40] sm:$0xff]
        %v550 = vld [vmem:[%s450 + $0x48] sm:$0xff]
        %v551 = vld [vmem:[%s450 + $0x50] sm:$0xff]
        %v552 = vld [vmem:[%s450 + $0x58] sm:$0xff]
        %v553 = vld [vmem:[%s450 + $0x60] sm:$0xff]
        %v554 = vld [vmem:[%s450 + $0x68] sm:$0xff]
        %v555 = vld [vmem:[%s450 + $0x70] sm:$0xff]
        %v556 = vld [vmem:[%s450 + $0x78] sm:$0xff]
        %v557 = vld [vmem:[%s459] sm:$0xff]
        %v558 = vld [vmem:[%s459 + $0x8] sm:$0xff]
        %v559 = vld [vmem:[%s459 + $0x10] sm:$0xff]
        %v560 = vld [vmem:[%s459 + $0x18] sm:$0xff]
        %v561 = vld [vmem:[%s468] sm:$0xff]
        %v562 = vld [vmem:[%s468 + $0x8] sm:$0xff]
        %v563 = vld [vmem:[%s468 + $0x10] sm:$0xff]
        %v564 = vld [vmem:[%s468 + $0x18] sm:$0xff]
        %v565 = vpack.c.bf16 %v558, %v557
        %v566 = vpack.c.bf16 %v560, %v559
        %v567 = vpack.c.bf16 %v542, %v541
        %v568 = vpack.c.bf16 %v544, %v543
        %v569 = vpack.c.bf16 %v546, %v545
        %v570 = vpack.c.bf16 %v548, %v547
        %v571 = vpack.c.bf16 %v550, %v549
        %v572 = vpack.c.bf16 %v552, %v551
        %v573 = vpack.c.bf16 %v554, %v553
        %v574 = vpack.c.bf16 %v556, %v555
        %v575 = vpack.c.bf16 %v562, %v561
        %v576 = vpack.c.bf16 %v564, %v563
        %v577 = vld [vmem:[#allocation9] sm:$0xf]
        %v578 = vld [vmem:[#allocation9 + $0x4] sm:$0xf]
        %v579 = vld [vmem:[#allocation9 + $0x8] sm:$0xf]
        %v580 = vld [vmem:[#allocation9 + $0xc] sm:$0xf]
        %v581 = vld [vmem:[#allocation9 + $0x10] sm:$0xf]
        %v582 = vld [vmem:[#allocation9 + $0x14] sm:$0xf]
        %v583 = vld [vmem:[#allocation9 + $0x18] sm:$0xf]
        %v584 = vld [vmem:[#allocation9 + $0x1c] sm:$0xf]
        %v585 = vld [vmem:[#allocation9 + $0x20] sm:$0xf]
        %v586 = vld [vmem:[#allocation9 + $0x24] sm:$0xf]
        %v587 = vld [vmem:[#allocation9 + $0x28] sm:$0xf]
        %v588 = vld [vmem:[#allocation9 + $0x2c] sm:$0xf]
        %v589 = vld [vmem:[#allocation9 + $0x30] sm:$0xf]
        %v590 = vld [vmem:[#allocation9 + $0x34] sm:$0xf]
        %v591 = vld [vmem:[#allocation9 + $0x38] sm:$0xf]
        %v592 = vld [vmem:[#allocation9 + $0x3c] sm:$0xf]
        %v594 = vlaneseq
        %v595 = vshrl.u32 %v594, 7
        %v596 = vsub.s32 0, %v595
        %v597 = vrot.slane %v538, %v596
        %v615 = vunpack.c.l.b16 %v577
        %v616 = vunpack.c.l.b16 %v578
        %v617 = vunpack.c.l.b16 %v579
        %v618 = vunpack.c.l.b16 %v580
        %v619 = vunpack.c.l.b16 %v581
        %v620 = vunpack.c.l.b16 %v582
        %v621 = vunpack.c.l.b16 %v583
        %v622 = vunpack.c.l.b16 %v584
        %v623 = vunpack.c.l.b16 %v585
        %v624 = vunpack.c.l.b16 %v586
        %v625 = vunpack.c.l.b16 %v587
        %v626 = vunpack.c.l.b16 %v588
        %v627 = vunpack.c.l.b16 %v589
        %v628 = vunpack.c.l.b16 %v590
        %v629 = vunpack.c.l.b16 %v591
        %v630 = vunpack.c.l.b16 %v592
        %v631 = vpack.c.b16 %v616, %v615
        %v632 = vpack.c.b16 %v618, %v617
        %v633 = vpack.c.b16 %v620, %v619
        %v634 = vpack.c.b16 %v622, %v621
        %v635 = vpack.c.b16 %v624, %v623
        %v636 = vpack.c.b16 %v626, %v625
        %v637 = vpack.c.b16 %v628, %v627
        %v638 = vpack.c.b16 %v630, %v629
        %647 = vmatprep.subr.bf16.mxu0 0
        %648 = vmatpush1.bf16.msra.mxu0 %v638
        %649 = vmatprep.subr.bf16.mxu0 0
        %650 = vmatpush1.bf16.msra.mxu0 %v637
        %651 = vmatprep.subr.bf16.mxu0 0
        %652 = vmatpush1.bf16.msra.mxu0 %v636
        %653 = vmatprep.subr.bf16.mxu0 0
        %654 = vmatpush1.bf16.msra.mxu0 %v635
        %655 = vmatprep.subr.bf16.mxu0 0
        %656 = vmatpush1.bf16.msra.mxu0 %v634
        %657 = vmatprep.subr.bf16.mxu0 0
        %658 = vmatpush1.bf16.msra.mxu0 %v633
        %659 = vmatprep.subr.bf16.mxu0 0
        %660 = vmatpush1.bf16.msra.mxu0 %v632
        %661 = vmatprep.subr.bf16.mxu0 0
        %662 = vmatpush1.bf16.msra.mxu0 %v631
        %663 = vmatprep.subr.bf16.mxu0 0
        %664 = vmatpush2.bf16.msra.mxu0 0
        %665 = vmatprep.subr.bf16.mxu0 0
        %666 = vmatpush2.bf16.msra.mxu0 0
        %667 = vmatprep.subr.bf16.mxu0 0
        %668 = vmatpush2.bf16.msra.mxu0 0
        %669 = vmatprep.subr.bf16.mxu0 0
        %670 = vmatpush2.bf16.msra.mxu0 0
        %671 = vmatprep.subr.bf16.mxu0 0
        %672 = vmatpush2.bf16.msra.mxu0 0
        %673 = vmatprep.subr.bf16.mxu0 0
        %674 = vmatpush2.bf16.msra.mxu0 0
        %675 = vmatprep.subr.bf16.mxu0 0
        %676 = vmatpush2.bf16.msra.mxu0 0
        %677 = vmatprep.subr.bf16.mxu0 0
        %678 = vmatpush2.bf16.msra.mxu0 0
        %679 = vmatprep.mubr.bf16.mxu0 0
        %680 = vmatmul.mubr.bf16.gmra.mxu0 %v565
        %v681 = vpop.f32.mrf.mxu0
        %v682 = vadd.f32 %v597, %v681
        %v683 = vpop.f32.mrf.mxu0
        %v684 = vpop.f32.mrf.mxu0
        %v685 = vadd.f32 %v597, %v684
        %v686 = vpop.f32.mrf.mxu0
        %687 = vmatprep.mubr.bf16.mxu0 0
        %688 = vmatmul.mubr.bf16.gmra.mxu0 %v566
        %v689 = vpop.f32.mrf.mxu0
        %v690 = vadd.f32 %v597, %v689
        %v691 = vpop.f32.mrf.mxu0
        %v692 = vpop.f32.mrf.mxu0
        %v693 = vadd.f32 %v597, %v692
        %v694 = vpop.f32.mrf.mxu0
        %695 = vmatprep.mubr.bf16.mxu0 0
        %696 = vmatmul.mubr.bf16.gmra.mxu0 %v567
        %v697 = vpop.f32.mrf.mxu0
        %v698 = vadd.f32 %v597, %v697
        %v699 = vpop.f32.mrf.mxu0
        %v700 = vpop.f32.mrf.mxu0
        %v701 = vadd.f32 %v597, %v700
        %v702 = vpop.f32.mrf.mxu0
        %703 = vmatprep.mubr.bf16.mxu0 0
        %704 = vmatmul.mubr.bf16.gmra.mxu0 %v568
        %v705 = vpop.f32.mrf.mxu0
        %v706 = vadd.f32 %v597, %v705
        %v707 = vpop.f32.mrf.mxu0
        %v708 = vpop.f32.mrf.mxu0
        %v709 = vadd.f32 %v597, %v708
        %v710 = vpop.f32.mrf.mxu0
        %711 = vmatprep.mubr.bf16.mxu0 0
        %712 = vmatmul.mubr.bf16.gmra.mxu0 %v569
        %v713 = vpop.f32.mrf.mxu0
        %v714 = vadd.f32 %v597, %v713
        %v715 = vpop.f32.mrf.mxu0
        %v716 = vpop.f32.mrf.mxu0
        %v717 = vadd.f32 %v597, %v716
        %v718 = vpop.f32.mrf.mxu0
        %719 = vmatprep.mubr.bf16.mxu0 0
        %720 = vmatmul.mubr.bf16.gmra.mxu0 %v570
        %v721 = vpop.f32.mrf.mxu0
        %v722 = vadd.f32 %v597, %v721
        %v723 = vpop.f32.mrf.mxu0
        %v724 = vpop.f32.mrf.mxu0
        %v725 = vadd.f32 %v597, %v724
        %v726 = vpop.f32.mrf.mxu0
        %727 = vmatprep.mubr.bf16.mxu0 0
        %728 = vmatmul.mubr.bf16.gmra.mxu0 %v571
        %v729 = vpop.f32.mrf.mxu0
        %v730 = vadd.f32 %v597, %v729
        %v731 = vpop.f32.mrf.mxu0
        %v732 = vpop.f32.mrf.mxu0
        %v733 = vadd.f32 %v597, %v732
        %v734 = vpop.f32.mrf.mxu0
        %735 = vmatprep.mubr.bf16.mxu0 0
        %736 = vmatmul.mubr.bf16.gmra.mxu0 %v572
        %v737 = vpop.f32.mrf.mxu0
        %v738 = vadd.f32 %v597, %v737
        %v739 = vpop.f32.mrf.mxu0
        %v740 = vpop.f32.mrf.mxu0
        %v741 = vadd.f32 %v597, %v740
        %v742 = vpop.f32.mrf.mxu0
        %743 = vmatprep.mubr.bf16.mxu0 0
        %744 = vmatmul.mubr.bf16.gmra.mxu0 %v573
        %v745 = vpop.f32.mrf.mxu0
        %v746 = vadd.f32 %v597, %v745
        %v747 = vpop.f32.mrf.mxu0
        %v748 = vpop.f32.mrf.mxu0
        %v749 = vadd.f32 %v597, %v748
        %v750 = vpop.f32.mrf.mxu0
        %751 = vmatprep.mubr.bf16.mxu0 0
        %752 = vmatmul.mubr.bf16.gmra.mxu0 %v574
        %v753 = vpop.f32.mrf.mxu0
        %v754 = vadd.f32 %v597, %v753
        %v755 = vpop.f32.mrf.mxu0
        %v756 = vpop.f32.mrf.mxu0
        %v757 = vadd.f32 %v597, %v756
        %v758 = vpop.f32.mrf.mxu0
        %759 = vmatprep.mubr.bf16.mxu0 0
        %760 = vmatmul.mubr.bf16.gmra.mxu0 %v575
        %v761 = vpop.f32.mrf.mxu0
        %v762 = vadd.f32 %v597, %v761
        %v763 = vpop.f32.mrf.mxu0
        %v764 = vpop.f32.mrf.mxu0
        %v765 = vadd.f32 %v597, %v764
        %v766 = vpop.f32.mrf.mxu0
        %767 = vmatprep.mubr.bf16.mxu0 0
        %768 = vmatmul.mubr.bf16.gmra.mxu0 %v576
        %v769 = vpop.f32.mrf.mxu0
        %v770 = vadd.f32 %v597, %v769
        %v771 = vpop.f32.mrf.mxu0
        %v772 = vpop.f32.mrf.mxu0
        %v773 = vadd.f32 %v597, %v772
        %v774 = vpop.f32.mrf.mxu0
        %775 = vdwg.mxu0
        %v776 = vmax.f32 %v682, 0.0
        %v777 = vmax.f32 %v685, 0.0
        %v778 = vmax.f32 %v690, 0.0
        %v779 = vmax.f32 %v693, 0.0
        %v780 = vmax.f32 %v698, 0.0
        %v781 = vmax.f32 %v701, 0.0
        %v782 = vmax.f32 %v706, 0.0
        %v783 = vmax.f32 %v709, 0.0
        %v784 = vmax.f32 %v714, 0.0
        %v785 = vmax.f32 %v717, 0.0
        %v786 = vmax.f32 %v722, 0.0
        %v787 = vmax.f32 %v725, 0.0
        %v788 = vmax.f32 %v730, 0.0
        %v789 = vmax.f32 %v733, 0.0
        %v790 = vmax.f32 %v738, 0.0
        %v791 = vmax.f32 %v741, 0.0
        %v792 = vmax.f32 %v746, 0.0
        %v793 = vmax.f32 %v749, 0.0
        %v794 = vmax.f32 %v754, 0.0
        %v795 = vmax.f32 %v757, 0.0
        %v796 = vmax.f32 %v762, 0.0
        %v797 = vmax.f32 %v765, 0.0
        %v798 = vmax.f32 %v770, 0.0
        %v799 = vmax.f32 %v773, 0.0
        %p800 = scmp.gt.s32.totalorder %s36, 0
        %s801 = scalar_select %p800, 1, 0
        %v802 = vstv %s801
        %vm803 = vcmp.eq.s32.totalorder %v802, 1
        %p804 = scmp.lt.s32.totalorder %s36, 1
        %s805 = scalar_select %p804, 1, 0
        %v806 = vstv %s805
        %vm807 = vcmp.eq.s32.totalorder %v806, 1
        %v808 = vsel %vm803, 1, 0
        %v809 = vsel %vm807, 1, 0
        %vm810 = vcmp.eq.s32.totalorder %v808, 1
        %vm811 = vcmp.eq.s32.totalorder %v809, 1
        %v812 = vsel %vm810, %v776, 0.0
        %v813 = vsel %vm810, %v777, 0.0
        %v814 = vsel %vm810, %v778, 0.0
        %v815 = vsel %vm810, %v779, 0.0
        %v816 = vsel 1, %v780, 0.0
        %v817 = vsel 1, %v781, 0.0
        %v818 = vsel 1, %v782, 0.0
        %v819 = vsel 1, %v783, 0.0
        %v820 = vsel 1, %v784, 0.0
        %v821 = vsel 1, %v785, 0.0
        %v822 = vsel 1, %v786, 0.0
        %v823 = vsel 1, %v787, 0.0
        %v824 = vsel 1, %v788, 0.0
        %v825 = vsel 1, %v789, 0.0
        %v826 = vsel 1, %v790, 0.0
        %v827 = vsel 1, %v791, 0.0
        %v828 = vsel 1, %v792, 0.0
        %v829 = vsel 1, %v793, 0.0
        %v830 = vsel 1, %v794, 0.0
        %v831 = vsel 1, %v795, 0.0
        %v832 = vsel %vm811, %v796, 0.0
        %v833 = vsel %vm811, %v797, 0.0
        %v834 = vsel %vm811, %v798, 0.0
        %v835 = vsel %vm811, %v799, 0.0
        %836 = vst [vmem:[#allocation2] sm:$0xff] 0.0
        %837 = vst [vmem:[#allocation2 + $0x20] sm:$0xff] 0.0
        %838 = vst [vmem:[#allocation2 + $0x40] sm:$0xff] 0.0
        %839 = vst [vmem:[#allocation2 + $0x60] sm:$0xff] 0.0
        %840 = vst [vmem:[#allocation2 + $0x80] sm:$0xff] 0.0
        %841 = vst [vmem:[#allocation2 + $0xa0] sm:$0xff] 0.0
        %842 = vst [vmem:[#allocation2 + $0xc0] sm:$0xff] 0.0
        %843 = vst [vmem:[#allocation2 + $0xe0] sm:$0xff] 0.0
        %844 = vst [vmem:[#allocation2 + $0x100] sm:$0xff] 0.0
        %845 = vst [vmem:[#allocation2 + $0x120] sm:$0xff] 0.0
        %846 = vst [vmem:[#allocation2 + $0x140] sm:$0xff] 0.0
        %847 = vst [vmem:[#allocation2 + $0x160] sm:$0xff] 0.0
        %848 = vst [vmem:[#allocation2 + $0x18] sm:$0x3] 0.0
        %849 = vst [vmem:[#allocation2 + $0x38] sm:$0x3] 0.0
        %850 = vst [vmem:[#allocation2 + $0x58] sm:$0x3] 0.0
        %851 = vst [vmem:[#allocation2 + $0x78] sm:$0x3] 0.0
        %852 = vst [vmem:[#allocation2 + $0x98] sm:$0x3] 0.0
        %853 = vst [vmem:[#allocation2 + $0xb8] sm:$0x3] 0.0
        %854 = vst [vmem:[#allocation2 + $0xd8] sm:$0x3] 0.0
        %855 = vst [vmem:[#allocation2 + $0xf8] sm:$0x3] 0.0
        %856 = vst [vmem:[#allocation2 + $0x118] sm:$0x3] 0.0
        %857 = vst [vmem:[#allocation2 + $0x138] sm:$0x3] 0.0
        %858 = vst [vmem:[#allocation2 + $0x158] sm:$0x3] 0.0
        %859 = vst [vmem:[#allocation2 + $0x178] sm:$0x3] 0.0
        %860 = vst [vmem:[#allocation2 + $0x8] sm:$0xff] %v812
        %861 = vst [vmem:[#allocation2 + $0x10] sm:$0xff] %v813
        %862 = vst [vmem:[#allocation2 + $0x28] sm:$0xff] %v814
        %863 = vst [vmem:[#allocation2 + $0x30] sm:$0xff] %v815
        %864 = vst [vmem:[#allocation2 + $0x48] sm:$0xff] %v816
        %865 = vst [vmem:[#allocation2 + $0x50] sm:$0xff] %v817
        %866 = vst [vmem:[#allocation2 + $0x68] sm:$0xff] %v818
        %867 = vst [vmem:[#allocation2 + $0x70] sm:$0xff] %v819
        %868 = vst [vmem:[#allocation2 + $0x88] sm:$0xff] %v820
        %869 = vst [vmem:[#allocation2 + $0x90] sm:$0xff] %v821
        %870 = vst [vmem:[#allocation2 + $0xa8] sm:$0xff] %v822
        %871 = vst [vmem:[#allocation2 + $0xb0] sm:$0xff] %v823
        %872 = vst [vmem:[#allocation2 + $0xc8] sm:$0xff] %v824
        %873 = vst [vmem:[#allocation2 + $0xd0] sm:$0xff] %v825
        %874 = vst [vmem:[#allocation2 + $0xe8] sm:$0xff] %v826
        %875 = vst [vmem:[#allocation2 + $0xf0] sm:$0xff] %v827
        %876 = vst [vmem:[#allocation2 + $0x108] sm:$0xff] %v828
        %877 = vst [vmem:[#allocation2 + $0x110] sm:$0xff] %v829
        %878 = vst [vmem:[#allocation2 + $0x128] sm:$0xff] %v830
        %879 = vst [vmem:[#allocation2 + $0x130] sm:$0xff] %v831
        %880 = vst [vmem:[#allocation2 + $0x148] sm:$0xff] %v832
        %881 = vst [vmem:[#allocation2 + $0x150] sm:$0xff] %v833
        %882 = vst [vmem:[#allocation2 + $0x168] sm:$0xff] %v834
        %883 = vst [vmem:[#allocation2 + $0x170] sm:$0xff] %v835
        %v884 = vld [vmem:[#allocation2 + $0x6] sm:$0xff]
        %v885 = vld [vmem:[#allocation2 + $0xe] sm:$0xff]
        %v886 = vld [vmem:[#allocation2 + $0x26] sm:$0xff]
        %v887 = vld [vmem:[#allocation2 + $0x2e] sm:$0xff]
        %v888 = vld [vmem:[#allocation2 + $0x46] sm:$0xff]
        %v889 = vld [vmem:[#allocation2 + $0x4e] sm:$0xff]
        %v890 = vld [vmem:[#allocation2 + $0x66] sm:$0xff]
        %v891 = vld [vmem:[#allocation2 + $0x6e] sm:$0xff]
        %v892 = vld [vmem:[#allocation2 + $0x86] sm:$0xff]
        %v893 = vld [vmem:[#allocation2 + $0x8e] sm:$0xff]
        %v894 = vld [vmem:[#allocation2 + $0xa6] sm:$0xff]
        %v895 = vld [vmem:[#allocation2 + $0xae] sm:$0xff]
        %v896 = vld [vmem:[#allocation2 + $0xc6] sm:$0xff]
        %v897 = vld [vmem:[#allocation2 + $0xce] sm:$0xff]
        %v898 = vld [vmem:[#allocation2 + $0xe6] sm:$0xff]
        %v899 = vld [vmem:[#allocation2 + $0xee] sm:$0xff]
        %v900 = vpack.c.bf16 %v885, %v884
        %v901 = vpack.c.bf16 %v887, %v886
        %v902 = vpack.c.bf16 %v889, %v888
        %v903 = vpack.c.bf16 %v891, %v890
        %v904 = vpack.c.bf16 %v893, %v892
        %v905 = vpack.c.bf16 %v895, %v894
        %v906 = vpack.c.bf16 %v897, %v896
        %v907 = vpack.c.bf16 %v899, %v898
        %v908 = vld [vmem:[#allocation2 + $0x8] sm:$0xff]
        %v909 = vld [vmem:[#allocation2 + $0x10] sm:$0xff]
        %v910 = vld [vmem:[#allocation2 + $0x28] sm:$0xff]
        %v911 = vld [vmem:[#allocation2 + $0x30] sm:$0xff]
        %v912 = vld [vmem:[#allocation2 + $0x48] sm:$0xff]
        %v913 = vld [vmem:[#allocation2 + $0x50] sm:$0xff]
        %v914 = vld [vmem:[#allocation2 + $0x68] sm:$0xff]
        %v915 = vld [vmem:[#allocation2 + $0x70] sm:$0xff]
        %v916 = vld [vmem:[#allocation2 + $0x88] sm:$0xff]
        %v917 = vld [vmem:[#allocation2 + $0x90] sm:$0xff]
        %v918 = vld [vmem:[#allocation2 + $0xa8] sm:$0xff]
        %v919 = vld [vmem:[#allocation2 + $0xb0] sm:$0xff]
        %v920 = vld [vmem:[#allocation2 + $0xc8] sm:$0xff]
        %v921 = vld [vmem:[#allocation2 + $0xd0] sm:$0xff]
        %v922 = vld [vmem:[#allocation2 + $0xe8] sm:$0xff]
        %v923 = vld [vmem:[#allocation2 + $0xf0] sm:$0xff]
        %v924 = vpack.c.bf16 %v909, %v908
        %v925 = vpack.c.bf16 %v911, %v910
        %v926 = vpack.c.bf16 %v913, %v912
        %v927 = vpack.c.bf16 %v915, %v914
        %v928 = vpack.c.bf16 %v917, %v916
        %v929 = vpack.c.bf16 %v919, %v918
        %v930 = vpack.c.bf16 %v921, %v920
        %v931 = vpack.c.bf16 %v923, %v922
        %v932 = vld [vmem:[#allocation2 + $0xa] sm:$0xff]
        %v933 = vld [vmem:[#allocation2 + $0x12] sm:$0xff]
        %v934 = vld [vmem:[#allocation2 + $0x2a] sm:$0xff]
        %v935 = vld [vmem:[#allocation2 + $0x32] sm:$0xff]
        %v936 = vld [vmem:[#allocation2 + $0x4a] sm:$0xff]
        %v937 = vld [vmem:[#allocation2 + $0x52] sm:$0xff]
        %v938 = vld [vmem:[#allocation2 + $0x6a] sm:$0xff]
        %v939 = vld [vmem:[#allocation2 + $0x72] sm:$0xff]
        %v940 = vld [vmem:[#allocation2 + $0x8a] sm:$0xff]
        %v941 = vld [vmem:[#allocation2 + $0x92] sm:$0xff]
        %v942 = vld [vmem:[#allocation2 + $0xaa] sm:$0xff]
        %v943 = vld [vmem:[#allocation2 + $0xb2] sm:$0xff]
        %v944 = vld [vmem:[#allocation2 + $0xca] sm:$0xff]
        %v945 = vld [vmem:[#allocation2 + $0xd2] sm:$0xff]
        %v946 = vld [vmem:[#allocation2 + $0xea] sm:$0xff]
        %v947 = vld [vmem:[#allocation2 + $0xf2] sm:$0xff]
        %v948 = vpack.c.bf16 %v933, %v932
        %v949 = vpack.c.bf16 %v935, %v934
        %v950 = vpack.c.bf16 %v937, %v936
        %v951 = vpack.c.bf16 %v939, %v938
        %v952 = vpack.c.bf16 %v941, %v940
        %v953 = vpack.c.bf16 %v943, %v942
        %v954 = vpack.c.bf16 %v945, %v944
        %v955 = vpack.c.bf16 %v947, %v946
        %s956 = scalar_lea.vmem [#allocation2], 64
        %v957 = vld [vmem:[%s956 + $0x6] sm:$0xff]
        %v958 = vld [vmem:[%s956 + $0xe] sm:$0xff]
        %v959 = vld [vmem:[%s956 + $0x26] sm:$0xff]
        %v960 = vld [vmem:[%s956 + $0x2e] sm:$0xff]
        %v961 = vld [vmem:[%s956 + $0x46] sm:$0xff]
        %v962 = vld [vmem:[%s956 + $0x4e] sm:$0xff]
        %v963 = vld [vmem:[%s956 + $0x66] sm:$0xff]
        %v964 = vld [vmem:[%s956 + $0x6e] sm:$0xff]
        %v965 = vld [vmem:[%s956 + $0x86] sm:$0xff]
        %v966 = vld [vmem:[%s956 + $0x8e] sm:$0xff]
        %v967 = vld [vmem:[%s956 + $0xa6] sm:$0xff]
        %v968 = vld [vmem:[%s956 + $0xae] sm:$0xff]
        %v969 = vld [vmem:[%s956 + $0xc6] sm:$0xff]
        %v970 = vld [vmem:[%s956 + $0xce] sm:$0xff]
        %v971 = vld [vmem:[%s956 + $0xe6] sm:$0xff]
        %v972 = vld [vmem:[%s956 + $0xee] sm:$0xff]
        %v973 = vpack.c.bf16 %v958, %v957
        %v974 = vpack.c.bf16 %v960, %v959
        %v975 = vpack.c.bf16 %v962, %v961
        %v976 = vpack.c.bf16 %v964, %v963
        %v977 = vpack.c.bf16 %v966, %v965
        %v978 = vpack.c.bf16 %v968, %v967
        %v979 = vpack.c.bf16 %v970, %v969
        %v980 = vpack.c.bf16 %v972, %v971
        %v981 = vld [vmem:[%s956 + $0x8] sm:$0xff]
        %v982 = vld [vmem:[%s956 + $0x10] sm:$0xff]
        %v983 = vld [vmem:[%s956 + $0x28] sm:$0xff]
        %v984 = vld [vmem:[%s956 + $0x30] sm:$0xff]
        %v985 = vld [vmem:[%s956 + $0x48] sm:$0xff]
        %v986 = vld [vmem:[%s956 + $0x50] sm:$0xff]
        %v987 = vld [vmem:[%s956 + $0x68] sm:$0xff]
        %v988 = vld [vmem:[%s956 + $0x70] sm:$0xff]
        %v989 = vld [vmem:[%s956 + $0x88] sm:$0xff]
        %v990 = vld [vmem:[%s956 + $0x90] sm:$0xff]
        %v991 = vld [vmem:[%s956 + $0xa8] sm:$0xff]
        %v992 = vld [vmem:[%s956 + $0xb0] sm:$0xff]
        %v993 = vld [vmem:[%s956 + $0xc8] sm:$0xff]
        %v994 = vld [vmem:[%s956 + $0xd0] sm:$0xff]
        %v995 = vld [vmem:[%s956 + $0xe8] sm:$0xff]
        %v996 = vld [vmem:[%s956 + $0xf0] sm:$0xff]
        %v997 = vpack.c.bf16 %v982, %v981
        %v998 = vpack.c.bf16 %v984, %v983
        %v999 = vpack.c.bf16 %v986, %v985
        %v1000 = vpack.c.bf16 %v988, %v987
        %v1001 = vpack.c.bf16 %v990, %v989
        %v1002 = vpack.c.bf16 %v992, %v991
        %v1003 = vpack.c.bf16 %v994, %v993
        %v1004 = vpack.c.bf16 %v996, %v995
        %v1005 = vld [vmem:[%s956 + $0xa] sm:$0xff]
        %v1006 = vld [vmem:[%s956 + $0x12] sm:$0xff]
        %v1007 = vld [vmem:[%s956 + $0x2a] sm:$0xff]
        %v1008 = vld [vmem:[%s956 + $0x32] sm:$0xff]
        %v1009 = vld [vmem:[%s956 + $0x4a] sm:$0xff]
        %v1010 = vld [vmem:[%s956 + $0x52] sm:$0xff]
        %v1011 = vld [vmem:[%s956 + $0x6a] sm:$0xff]
        %v1012 = vld [vmem:[%s956 + $0x72] sm:$0xff]
        %v1013 = vld [vmem:[%s956 + $0x8a] sm:$0xff]
        %v1014 = vld [vmem:[%s956 + $0x92] sm:$0xff]
        %v1015 = vld [vmem:[%s956 + $0xaa] sm:$0xff]
        %v1016 = vld [vmem:[%s956 + $0xb2] sm:$0xff]
        %v1017 = vld [vmem:[%s956 + $0xca] sm:$0xff]
        %v1018 = vld [vmem:[%s956 + $0xd2] sm:$0xff]
        %v1019 = vld [vmem:[%s956 + $0xea] sm:$0xff]
        %v1020 = vld [vmem:[%s956 + $0xf2] sm:$0xff]
        %v1021 = vpack.c.bf16 %v1006, %v1005
        %v1022 = vpack.c.bf16 %v1008, %v1007
        %v1023 = vpack.c.bf16 %v1010, %v1009
        %v1024 = vpack.c.bf16 %v1012, %v1011
        %v1025 = vpack.c.bf16 %v1014, %v1013
        %v1026 = vpack.c.bf16 %v1016, %v1015
        %v1027 = vpack.c.bf16 %v1018, %v1017
        %v1028 = vpack.c.bf16 %v1020, %v1019
        %s1029 = scalar_lea.vmem [#allocation2], 128
        %v1030 = vld [vmem:[%s1029 + $0x6] sm:$0xff]
        %v1031 = vld [vmem:[%s1029 + $0xe] sm:$0xff]
        %v1032 = vld [vmem:[%s1029 + $0x26] sm:$0xff]
        %v1033 = vld [vmem:[%s1029 + $0x2e] sm:$0xff]
        %v1034 = vld [vmem:[%s1029 + $0x46] sm:$0xff]
        %v1035 = vld [vmem:[%s1029 + $0x4e] sm:$0xff]
        %v1036 = vld [vmem:[%s1029 + $0x66] sm:$0xff]
        %v1037 = vld [vmem:[%s1029 + $0x6e] sm:$0xff]
        %v1038 = vld [vmem:[%s1029 + $0x86] sm:$0xff]
        %v1039 = vld [vmem:[%s1029 + $0x8e] sm:$0xff]
        %v1040 = vld [vmem:[%s1029 + $0xa6] sm:$0xff]
        %v1041 = vld [vmem:[%s1029 + $0xae] sm:$0xff]
        %v1042 = vld [vmem:[%s1029 + $0xc6] sm:$0xff]
        %v1043 = vld [vmem:[%s1029 + $0xce] sm:$0xff]
        %v1044 = vld [vmem:[%s1029 + $0xe6] sm:$0xff]
        %v1045 = vld [vmem:[%s1029 + $0xee] sm:$0xff]
        %v1046 = vpack.c.bf16 %v1031, %v1030
        %v1047 = vpack.c.bf16 %v1033, %v1032
        %v1048 = vpack.c.bf16 %v1035, %v1034
        %v1049 = vpack.c.bf16 %v1037, %v1036
        %v1050 = vpack.c.bf16 %v1039, %v1038
        %v1051 = vpack.c.bf16 %v1041, %v1040
        %v1052 = vpack.c.bf16 %v1043, %v1042
        %v1053 = vpack.c.bf16 %v1045, %v1044
        %v1054 = vld [vmem:[%s1029 + $0x8] sm:$0xff]
        %v1055 = vld [vmem:[%s1029 + $0x10] sm:$0xff]
        %v1056 = vld [vmem:[%s1029 + $0x28] sm:$0xff]
        %v1057 = vld [vmem:[%s1029 + $0x30] sm:$0xff]
        %v1058 = vld [vmem:[%s1029 + $0x48] sm:$0xff]
        %v1059 = vld [vmem:[%s1029 + $0x50] sm:$0xff]
        %v1060 = vld [vmem:[%s1029 + $0x68] sm:$0xff]
        %v1061 = vld [vmem:[%s1029 + $0x70] sm:$0xff]
        %v1062 = vld [vmem:[%s1029 + $0x88] sm:$0xff]
        %v1063 = vld [vmem:[%s1029 + $0x90] sm:$0xff]
        %v1064 = vld [vmem:[%s1029 + $0xa8] sm:$0xff]
        %v1065 = vld [vmem:[%s1029 + $0xb0] sm:$0xff]
        %v1066 = vld [vmem:[%s1029 + $0xc8] sm:$0xff]
        %v1067 = vld [vmem:[%s1029 + $0xd0] sm:$0xff]
        %v1068 = vld [vmem:[%s1029 + $0xe8] sm:$0xff]
        %v1069 = vld [vmem:[%s1029 + $0xf0] sm:$0xff]
        %v1070 = vpack.c.bf16 %v1055, %v1054
        %v1071 = vpack.c.bf16 %v1057, %v1056
        %v1072 = vpack.c.bf16 %v1059, %v1058
        %v1073 = vpack.c.bf16 %v1061, %v1060
        %v1074 = vpack.c.bf16 %v1063, %v1062
        %v1075 = vpack.c.bf16 %v1065, %v1064
        %v1076 = vpack.c.bf16 %v1067, %v1066
        %v1077 = vpack.c.bf16 %v1069, %v1068
        %v1078 = vld [vmem:[%s1029 + $0xa] sm:$0xff]
        %v1079 = vld [vmem:[%s1029 + $0x12] sm:$0xff]
        %v1080 = vld [vmem:[%s1029 + $0x2a] sm:$0xff]
        %v1081 = vld [vmem:[%s1029 + $0x32] sm:$0xff]
        %v1082 = vld [vmem:[%s1029 + $0x4a] sm:$0xff]
        %v1083 = vld [vmem:[%s1029 + $0x52] sm:$0xff]
        %v1084 = vld [vmem:[%s1029 + $0x6a] sm:$0xff]
        %v1085 = vld [vmem:[%s1029 + $0x72] sm:$0xff]
        %v1086 = vld [vmem:[%s1029 + $0x8a] sm:$0xff]
        %v1087 = vld [vmem:[%s1029 + $0x92] sm:$0xff]
        %v1088 = vld [vmem:[%s1029 + $0xaa] sm:$0xff]
        %v1089 = vld [vmem:[%s1029 + $0xb2] sm:$0xff]
        %v1090 = vld [vmem:[%s1029 + $0xca] sm:$0xff]
        %v1091 = vld [vmem:[%s1029 + $0xd2] sm:$0xff]
        %v1092 = vld [vmem:[%s1029 + $0xea] sm:$0xff]
        %v1093 = vld [vmem:[%s1029 + $0xf2] sm:$0xff]
        %v1094 = vpack.c.bf16 %v1079, %v1078
        %v1095 = vpack.c.bf16 %v1081, %v1080
        %v1096 = vpack.c.bf16 %v1083, %v1082
        %v1097 = vpack.c.bf16 %v1085, %v1084
        %v1098 = vpack.c.bf16 %v1087, %v1086
        %v1099 = vpack.c.bf16 %v1089, %v1088
        %v1100 = vpack.c.bf16 %v1091, %v1090
        %v1101 = vpack.c.bf16 %v1093, %v1092
        %v1102 = vld [vmem:[#allocation11] sm:$0xf]
        %v1103 = vld [vmem:[#allocation11 + $0x4] sm:$0xf]
        %v1104 = vld [vmem:[#allocation11 + $0x8] sm:$0xf]
        %v1105 = vld [vmem:[#allocation11 + $0xc] sm:$0xf]
        %v1106 = vld [vmem:[#allocation11 + $0x10] sm:$0xf]
        %v1107 = vld [vmem:[#allocation11 + $0x14] sm:$0xf]
        %v1108 = vld [vmem:[#allocation11 + $0x18] sm:$0xf]
        %v1109 = vld [vmem:[#allocation11 + $0x1c] sm:$0xf]
        %v1110 = vld [vmem:[#allocation11 + $0x20] sm:$0xf]
        %v1111 = vld [vmem:[#allocation11 + $0x24] sm:$0xf]
        %v1112 = vld [vmem:[#allocation11 + $0x28] sm:$0xf]
        %v1113 = vld [vmem:[#allocation11 + $0x2c] sm:$0xf]
        %v1114 = vld [vmem:[#allocation11 + $0x30] sm:$0xf]
        %v1115 = vld [vmem:[#allocation11 + $0x34] sm:$0xf]
        %v1116 = vld [vmem:[#allocation11 + $0x38] sm:$0xf]
        %v1117 = vld [vmem:[#allocation11 + $0x3c] sm:$0xf]
        %v1118 = vld [vmem:[#allocation11 + $0x40] sm:$0xf]
        %v1119 = vld [vmem:[#allocation11 + $0x44] sm:$0xf]
        %v1120 = vld [vmem:[#allocation11 + $0x48] sm:$0xf]
        %v1121 = vld [vmem:[#allocation11 + $0x4c] sm:$0xf]
        %v1122 = vld [vmem:[#allocation11 + $0x50] sm:$0xf]
        %v1123 = vld [vmem:[#allocation11 + $0x54] sm:$0xf]
        %v1124 = vld [vmem:[#allocation11 + $0x58] sm:$0xf]
        %v1125 = vld [vmem:[#allocation11 + $0x5c] sm:$0xf]
        %v1126 = vld [vmem:[#allocation11 + $0x60] sm:$0xf]
        %v1127 = vld [vmem:[#allocation11 + $0x64] sm:$0xf]
        %v1128 = vld [vmem:[#allocation11 + $0x68] sm:$0xf]
        %v1129 = vld [vmem:[#allocation11 + $0x6c] sm:$0xf]
        %v1130 = vld [vmem:[#allocation11 + $0x70] sm:$0xf]
        %v1131 = vld [vmem:[#allocation11 + $0x74] sm:$0xf]
        %v1132 = vld [vmem:[#allocation11 + $0x78] sm:$0xf]
        %v1133 = vld [vmem:[#allocation11 + $0x7c] sm:$0xf]
        %v1134 = vld [vmem:[#allocation11 + $0x80] sm:$0xf]
        %v1135 = vld [vmem:[#allocation11 + $0x84] sm:$0xf]
        %v1136 = vld [vmem:[#allocation11 + $0x88] sm:$0xf]
        %v1137 = vld [vmem:[#allocation11 + $0x8c] sm:$0xf]
        %v1138 = vld [vmem:[#allocation11 + $0x90] sm:$0xf]
        %v1139 = vld [vmem:[#allocation11 + $0x94] sm:$0xf]
        %v1140 = vld [vmem:[#allocation11 + $0x98] sm:$0xf]
        %v1141 = vld [vmem:[#allocation11 + $0x9c] sm:$0xf]
        %v1142 = vld [vmem:[#allocation11 + $0xa0] sm:$0xf]
        %v1143 = vld [vmem:[#allocation11 + $0xa4] sm:$0xf]
        %v1144 = vld [vmem:[#allocation11 + $0xa8] sm:$0xf]
        %v1145 = vld [vmem:[#allocation11 + $0xac] sm:$0xf]
        %v1146 = vld [vmem:[#allocation11 + $0xb0] sm:$0xf]
        %v1147 = vld [vmem:[#allocation11 + $0xb4] sm:$0xf]
        %v1148 = vld [vmem:[#allocation11 + $0xb8] sm:$0xf]
        %v1149 = vld [vmem:[#allocation11 + $0xbc] sm:$0xf]
        %v1150 = vld [vmem:[#allocation11 + $0xc0] sm:$0xf]
        %v1151 = vld [vmem:[#allocation11 + $0xc4] sm:$0xf]
        %v1152 = vld [vmem:[#allocation11 + $0xc8] sm:$0xf]
        %v1153 = vld [vmem:[#allocation11 + $0xcc] sm:$0xf]
        %v1154 = vld [vmem:[#allocation11 + $0xd0] sm:$0xf]
        %v1155 = vld [vmem:[#allocation11 + $0xd4] sm:$0xf]
        %v1156 = vld [vmem:[#allocation11 + $0xd8] sm:$0xf]
        %v1157 = vld [vmem:[#allocation11 + $0xdc] sm:$0xf]
        %v1158 = vld [vmem:[#allocation11 + $0xe0] sm:$0xf]
        %v1159 = vld [vmem:[#allocation11 + $0xe4] sm:$0xf]
        %v1160 = vld [vmem:[#allocation11 + $0xe8] sm:$0xf]
        %v1161 = vld [vmem:[#allocation11 + $0xec] sm:$0xf]
        %v1162 = vld [vmem:[#allocation11 + $0xf0] sm:$0xf]
        %v1163 = vld [vmem:[#allocation11 + $0xf4] sm:$0xf]
        %v1164 = vld [vmem:[#allocation11 + $0xf8] sm:$0xf]
        %v1165 = vld [vmem:[#allocation11 + $0xfc] sm:$0xf]
        %v1166 = vld [vmem:[#allocation11 + $0x100] sm:$0xf]
        %v1167 = vld [vmem:[#allocation11 + $0x104] sm:$0xf]
        %v1168 = vld [vmem:[#allocation11 + $0x108] sm:$0xf]
        %v1169 = vld [vmem:[#allocation11 + $0x10c] sm:$0xf]
        %v1170 = vld [vmem:[#allocation11 + $0x110] sm:$0xf]
        %v1171 = vld [vmem:[#allocation11 + $0x114] sm:$0xf]
        %v1172 = vld [vmem:[#allocation11 + $0x118] sm:$0xf]
        %v1173 = vld [vmem:[#allocation11 + $0x11c] sm:$0xf]
        %v1174 = vld [vmem:[#allocation11 + $0x120] sm:$0xf]
        %v1175 = vld [vmem:[#allocation11 + $0x124] sm:$0xf]
        %v1176 = vld [vmem:[#allocation11 + $0x128] sm:$0xf]
        %v1177 = vld [vmem:[#allocation11 + $0x12c] sm:$0xf]
        %v1178 = vld [vmem:[#allocation11 + $0x130] sm:$0xf]
        %v1179 = vld [vmem:[#allocation11 + $0x134] sm:$0xf]
        %v1180 = vld [vmem:[#allocation11 + $0x138] sm:$0xf]
        %v1181 = vld [vmem:[#allocation11 + $0x13c] sm:$0xf]
        %v1182 = vld [vmem:[#allocation11 + $0x140] sm:$0xf]
        %v1183 = vld [vmem:[#allocation11 + $0x144] sm:$0xf]
        %v1184 = vld [vmem:[#allocation11 + $0x148] sm:$0xf]
        %v1185 = vld [vmem:[#allocation11 + $0x14c] sm:$0xf]
        %v1186 = vld [vmem:[#allocation11 + $0x150] sm:$0xf]
        %v1187 = vld [vmem:[#allocation11 + $0x154] sm:$0xf]
        %v1188 = vld [vmem:[#allocation11 + $0x158] sm:$0xf]
        %v1189 = vld [vmem:[#allocation11 + $0x15c] sm:$0xf]
        %v1190 = vld [vmem:[#allocation11 + $0x160] sm:$0xf]
        %v1191 = vld [vmem:[#allocation11 + $0x164] sm:$0xf]
        %v1192 = vld [vmem:[#allocation11 + $0x168] sm:$0xf]
        %v1193 = vld [vmem:[#allocation11 + $0x16c] sm:$0xf]
        %v1194 = vld [vmem:[#allocation11 + $0x170] sm:$0xf]
        %v1195 = vld [vmem:[#allocation11 + $0x174] sm:$0xf]
        %v1196 = vld [vmem:[#allocation11 + $0x178] sm:$0xf]
        %v1197 = vld [vmem:[#allocation11 + $0x17c] sm:$0xf]
        %v1198 = vld [vmem:[#allocation11 + $0x180] sm:$0xf]
        %v1199 = vld [vmem:[#allocation11 + $0x184] sm:$0xf]
        %v1200 = vld [vmem:[#allocation11 + $0x188] sm:$0xf]
        %v1201 = vld [vmem:[#allocation11 + $0x18c] sm:$0xf]
        %v1202 = vld [vmem:[#allocation11 + $0x190] sm:$0xf]
        %v1203 = vld [vmem:[#allocation11 + $0x194] sm:$0xf]
        %v1204 = vld [vmem:[#allocation11 + $0x198] sm:$0xf]
        %v1205 = vld [vmem:[#allocation11 + $0x19c] sm:$0xf]
        %v1206 = vld [vmem:[#allocation11 + $0x1a0] sm:$0xf]
        %v1207 = vld [vmem:[#allocation11 + $0x1a4] sm:$0xf]
        %v1208 = vld [vmem:[#allocation11 + $0x1a8] sm:$0xf]
        %v1209 = vld [vmem:[#allocation11 + $0x1ac] sm:$0xf]
        %v1210 = vld [vmem:[#allocation11 + $0x1b0] sm:$0xf]
        %v1211 = vld [vmem:[#allocation11 + $0x1b4] sm:$0xf]
        %v1212 = vld [vmem:[#allocation11 + $0x1b8] sm:$0xf]
        %v1213 = vld [vmem:[#allocation11 + $0x1bc] sm:$0xf]
        %v1214 = vld [vmem:[#allocation11 + $0x1c0] sm:$0xf]
        %v1215 = vld [vmem:[#allocation11 + $0x1c4] sm:$0xf]
        %v1216 = vld [vmem:[#allocation11 + $0x1c8] sm:$0xf]
        %v1217 = vld [vmem:[#allocation11 + $0x1cc] sm:$0xf]
        %v1218 = vld [vmem:[#allocation11 + $0x1d0] sm:$0xf]
        %v1219 = vld [vmem:[#allocation11 + $0x1d4] sm:$0xf]
        %v1220 = vld [vmem:[#allocation11 + $0x1d8] sm:$0xf]
        %v1221 = vld [vmem:[#allocation11 + $0x1dc] sm:$0xf]
        %v1222 = vld [vmem:[#allocation11 + $0x1e0] sm:$0xf]
        %v1223 = vld [vmem:[#allocation11 + $0x1e4] sm:$0xf]
        %v1224 = vld [vmem:[#allocation11 + $0x1e8] sm:$0xf]
        %v1225 = vld [vmem:[#allocation11 + $0x1ec] sm:$0xf]
        %v1226 = vld [vmem:[#allocation11 + $0x1f0] sm:$0xf]
        %v1227 = vld [vmem:[#allocation11 + $0x1f4] sm:$0xf]
        %v1228 = vld [vmem:[#allocation11 + $0x1f8] sm:$0xf]
        %v1229 = vld [vmem:[#allocation11 + $0x1fc] sm:$0xf]
        %v1230 = vld [vmem:[#allocation11 + $0x200] sm:$0xf]
        %v1231 = vld [vmem:[#allocation11 + $0x204] sm:$0xf]
        %v1232 = vld [vmem:[#allocation11 + $0x208] sm:$0xf]
        %v1233 = vld [vmem:[#allocation11 + $0x20c] sm:$0xf]
        %v1234 = vld [vmem:[#allocation11 + $0x210] sm:$0xf]
        %v1235 = vld [vmem:[#allocation11 + $0x214] sm:$0xf]
        %v1236 = vld [vmem:[#allocation11 + $0x218] sm:$0xf]
        %v1237 = vld [vmem:[#allocation11 + $0x21c] sm:$0xf]
        %v1238 = vld [vmem:[#allocation11 + $0x220] sm:$0xf]
        %v1239 = vld [vmem:[#allocation11 + $0x224] sm:$0xf]
        %v1240 = vld [vmem:[#allocation11 + $0x228] sm:$0xf]
        %v1241 = vld [vmem:[#allocation11 + $0x22c] sm:$0xf]
        %v1242 = vld [vmem:[#allocation11 + $0x230] sm:$0xf]
        %v1243 = vld [vmem:[#allocation11 + $0x234] sm:$0xf]
        %v1244 = vld [vmem:[#allocation11 + $0x238] sm:$0xf]
        %v1245 = vld [vmem:[#allocation11 + $0x23c] sm:$0xf]
        %v1247 = vlaneseq
        %v1248 = vshrl.u32 %v1247, 7
        %v1249 = vsub.s32 0, %v1248
        %v1250 = vrot.slane %v539, %v1249
        %v1396 = vunpack.c.l.b16 %v1102
        %v1397 = vunpack.c.l.b16 %v1103
        %v1398 = vunpack.c.l.b16 %v1104
        %v1399 = vunpack.c.l.b16 %v1105
        %v1400 = vunpack.c.l.b16 %v1106
        %v1401 = vunpack.c.l.b16 %v1107
        %v1402 = vunpack.c.l.b16 %v1108
        %v1403 = vunpack.c.l.b16 %v1109
        %v1404 = vunpack.c.l.b16 %v1110
        %v1405 = vunpack.c.l.b16 %v1111
        %v1406 = vunpack.c.l.b16 %v1112
        %v1407 = vunpack.c.l.b16 %v1113
        %v1408 = vunpack.c.l.b16 %v1114
        %v1409 = vunpack.c.l.b16 %v1115
        %v1410 = vunpack.c.l.b16 %v1116
        %v1411 = vunpack.c.l.b16 %v1117
        %v1412 = vunpack.c.l.b16 %v1118
        %v1413 = vunpack.c.l.b16 %v1119
        %v1414 = vunpack.c.l.b16 %v1120
        %v1415 = vunpack.c.l.b16 %v1121
        %v1416 = vunpack.c.l.b16 %v1122
        %v1417 = vunpack.c.l.b16 %v1123
        %v1418 = vunpack.c.l.b16 %v1124
        %v1419 = vunpack.c.l.b16 %v1125
        %v1420 = vunpack.c.l.b16 %v1126
        %v1421 = vunpack.c.l.b16 %v1127
        %v1422 = vunpack.c.l.b16 %v1128
        %v1423 = vunpack.c.l.b16 %v1129
        %v1424 = vunpack.c.l.b16 %v1130
        %v1425 = vunpack.c.l.b16 %v1131
        %v1426 = vunpack.c.l.b16 %v1132
        %v1427 = vunpack.c.l.b16 %v1133
        %v1428 = vunpack.c.l.b16 %v1134
        %v1429 = vunpack.c.l.b16 %v1135
        %v1430 = vunpack.c.l.b16 %v1136
        %v1431 = vunpack.c.l.b16 %v1137
        %v1432 = vunpack.c.l.b16 %v1138
        %v1433 = vunpack.c.l.b16 %v1139
        %v1434 = vunpack.c.l.b16 %v1140
        %v1435 = vunpack.c.l.b16 %v1141
        %v1436 = vunpack.c.l.b16 %v1142
        %v1437 = vunpack.c.l.b16 %v1143
        %v1438 = vunpack.c.l.b16 %v1144
        %v1439 = vunpack.c.l.b16 %v1145
        %v1440 = vunpack.c.l.b16 %v1146
        %v1441 = vunpack.c.l.b16 %v1147
        %v1442 = vunpack.c.l.b16 %v1148
        %v1443 = vunpack.c.l.b16 %v1149
        %v1444 = vunpack.c.l.b16 %v1150
        %v1445 = vunpack.c.l.b16 %v1151
        %v1446 = vunpack.c.l.b16 %v1152
        %v1447 = vunpack.c.l.b16 %v1153
        %v1448 = vunpack.c.l.b16 %v1154
        %v1449 = vunpack.c.l.b16 %v1155
        %v1450 = vunpack.c.l.b16 %v1156
        %v1451 = vunpack.c.l.b16 %v1157
        %v1452 = vunpack.c.l.b16 %v1158
        %v1453 = vunpack.c.l.b16 %v1159
        %v1454 = vunpack.c.l.b16 %v1160
        %v1455 = vunpack.c.l.b16 %v1161
        %v1456 = vunpack.c.l.b16 %v1162
        %v1457 = vunpack.c.l.b16 %v1163
        %v1458 = vunpack.c.l.b16 %v1164
        %v1459 = vunpack.c.l.b16 %v1165
        %v1460 = vunpack.c.l.b16 %v1166
        %v1461 = vunpack.c.l.b16 %v1167
        %v1462 = vunpack.c.l.b16 %v1168
        %v1463 = vunpack.c.l.b16 %v1169
        %v1464 = vunpack.c.l.b16 %v1170
        %v1465 = vunpack.c.l.b16 %v1171
        %v1466 = vunpack.c.l.b16 %v1172
        %v1467 = vunpack.c.l.b16 %v1173
        %v1468 = vunpack.c.l.b16 %v1174
        %v1469 = vunpack.c.l.b16 %v1175
        %v1470 = vunpack.c.l.b16 %v1176
        %v1471 = vunpack.c.l.b16 %v1177
        %v1472 = vunpack.c.l.b16 %v1178
        %v1473 = vunpack.c.l.b16 %v1179
        %v1474 = vunpack.c.l.b16 %v1180
        %v1475 = vunpack.c.l.b16 %v1181
        %v1476 = vunpack.c.l.b16 %v1182
        %v1477 = vunpack.c.l.b16 %v1183
        %v1478 = vunpack.c.l.b16 %v1184
        %v1479 = vunpack.c.l.b16 %v1185
        %v1480 = vunpack.c.l.b16 %v1186
        %v1481 = vunpack.c.l.b16 %v1187
        %v1482 = vunpack.c.l.b16 %v1188
        %v1483 = vunpack.c.l.b16 %v1189
        %v1484 = vunpack.c.l.b16 %v1190
        %v1485 = vunpack.c.l.b16 %v1191
        %v1486 = vunpack.c.l.b16 %v1192
        %v1487 = vunpack.c.l.b16 %v1193
        %v1488 = vunpack.c.l.b16 %v1194
        %v1489 = vunpack.c.l.b16 %v1195
        %v1490 = vunpack.c.l.b16 %v1196
        %v1491 = vunpack.c.l.b16 %v1197
        %v1492 = vunpack.c.l.b16 %v1198
        %v1493 = vunpack.c.l.b16 %v1199
        %v1494 = vunpack.c.l.b16 %v1200
        %v1495 = vunpack.c.l.b16 %v1201
        %v1496 = vunpack.c.l.b16 %v1202
        %v1497 = vunpack.c.l.b16 %v1203
        %v1498 = vunpack.c.l.b16 %v1204
        %v1499 = vunpack.c.l.b16 %v1205
        %v1500 = vunpack.c.l.b16 %v1206
        %v1501 = vunpack.c.l.b16 %v1207
        %v1502 = vunpack.c.l.b16 %v1208
        %v1503 = vunpack.c.l.b16 %v1209
        %v1504 = vunpack.c.l.b16 %v1210
        %v1505 = vunpack.c.l.b16 %v1211
        %v1506 = vunpack.c.l.b16 %v1212
        %v1507 = vunpack.c.l.b16 %v1213
        %v1508 = vunpack.c.l.b16 %v1214
        %v1509 = vunpack.c.l.b16 %v1215
        %v1510 = vunpack.c.l.b16 %v1216
        %v1511 = vunpack.c.l.b16 %v1217
        %v1512 = vunpack.c.l.b16 %v1218
        %v1513 = vunpack.c.l.b16 %v1219
        %v1514 = vunpack.c.l.b16 %v1220
        %v1515 = vunpack.c.l.b16 %v1221
        %v1516 = vunpack.c.l.b16 %v1222
        %v1517 = vunpack.c.l.b16 %v1223
        %v1518 = vunpack.c.l.b16 %v1224
        %v1519 = vunpack.c.l.b16 %v1225
        %v1520 = vunpack.c.l.b16 %v1226
        %v1521 = vunpack.c.l.b16 %v1227
        %v1522 = vunpack.c.l.b16 %v1228
        %v1523 = vunpack.c.l.b16 %v1229
        %v1524 = vunpack.c.l.b16 %v1230
        %v1525 = vunpack.c.l.b16 %v1231
        %v1526 = vunpack.c.l.b16 %v1232
        %v1527 = vunpack.c.l.b16 %v1233
        %v1528 = vunpack.c.l.b16 %v1234
        %v1529 = vunpack.c.l.b16 %v1235
        %v1530 = vunpack.c.l.b16 %v1236
        %v1531 = vunpack.c.l.b16 %v1237
        %v1532 = vunpack.c.l.b16 %v1238
        %v1533 = vunpack.c.l.b16 %v1239
        %v1534 = vunpack.c.l.b16 %v1240
        %v1535 = vunpack.c.l.b16 %v1241
        %v1536 = vunpack.c.l.b16 %v1242
        %v1537 = vunpack.c.l.b16 %v1243
        %v1538 = vunpack.c.l.b16 %v1244
        %v1539 = vunpack.c.l.b16 %v1245
        %v1540 = vpack.c.b16 %v1397, %v1396
        %v1541 = vpack.c.b16 %v1399, %v1398
        %v1542 = vpack.c.b16 %v1401, %v1400
        %v1543 = vpack.c.b16 %v1403, %v1402
        %v1544 = vpack.c.b16 %v1405, %v1404
        %v1545 = vpack.c.b16 %v1407, %v1406
        %v1546 = vpack.c.b16 %v1409, %v1408
        %v1547 = vpack.c.b16 %v1411, %v1410
        %v1548 = vpack.c.b16 %v1413, %v1412
        %v1549 = vpack.c.b16 %v1415, %v1414
        %v1550 = vpack.c.b16 %v1417, %v1416
        %v1551 = vpack.c.b16 %v1419, %v1418
        %v1552 = vpack.c.b16 %v1421, %v1420
        %v1553 = vpack.c.b16 %v1423, %v1422
        %v1554 = vpack.c.b16 %v1425, %v1424
        %v1555 = vpack.c.b16 %v1427, %v1426
        %v1556 = vpack.c.b16 %v1429, %v1428
        %v1557 = vpack.c.b16 %v1431, %v1430
        %v1558 = vpack.c.b16 %v1433, %v1432
        %v1559 = vpack.c.b16 %v1435, %v1434
        %v1560 = vpack.c.b16 %v1437, %v1436
        %v1561 = vpack.c.b16 %v1439, %v1438
        %v1562 = vpack.c.b16 %v1441, %v1440
        %v1563 = vpack.c.b16 %v1443, %v1442
        %v1564 = vpack.c.b16 %v1445, %v1444
        %v1565 = vpack.c.b16 %v1447, %v1446
        %v1566 = vpack.c.b16 %v1449, %v1448
        %v1567 = vpack.c.b16 %v1451, %v1450
        %v1568 = vpack.c.b16 %v1453, %v1452
        %v1569 = vpack.c.b16 %v1455, %v1454
        %v1570 = vpack.c.b16 %v1457, %v1456
        %v1571 = vpack.c.b16 %v1459, %v1458
        %v1572 = vpack.c.b16 %v1461, %v1460
        %v1573 = vpack.c.b16 %v1463, %v1462
        %v1574 = vpack.c.b16 %v1465, %v1464
        %v1575 = vpack.c.b16 %v1467, %v1466
        %v1576 = vpack.c.b16 %v1469, %v1468
        %v1577 = vpack.c.b16 %v1471, %v1470
        %v1578 = vpack.c.b16 %v1473, %v1472
        %v1579 = vpack.c.b16 %v1475, %v1474
        %v1580 = vpack.c.b16 %v1477, %v1476
        %v1581 = vpack.c.b16 %v1479, %v1478
        %v1582 = vpack.c.b16 %v1481, %v1480
        %v1583 = vpack.c.b16 %v1483, %v1482
        %v1584 = vpack.c.b16 %v1485, %v1484
        %v1585 = vpack.c.b16 %v1487, %v1486
        %v1586 = vpack.c.b16 %v1489, %v1488
        %v1587 = vpack.c.b16 %v1491, %v1490
        %v1588 = vpack.c.b16 %v1493, %v1492
        %v1589 = vpack.c.b16 %v1495, %v1494
        %v1590 = vpack.c.b16 %v1497, %v1496
        %v1591 = vpack.c.b16 %v1499, %v1498
        %v1592 = vpack.c.b16 %v1501, %v1500
        %v1593 = vpack.c.b16 %v1503, %v1502
        %v1594 = vpack.c.b16 %v1505, %v1504
        %v1595 = vpack.c.b16 %v1507, %v1506
        %v1596 = vpack.c.b16 %v1509, %v1508
        %v1597 = vpack.c.b16 %v1511, %v1510
        %v1598 = vpack.c.b16 %v1513, %v1512
        %v1599 = vpack.c.b16 %v1515, %v1514
        %v1600 = vpack.c.b16 %v1517, %v1516
        %v1601 = vpack.c.b16 %v1519, %v1518
        %v1602 = vpack.c.b16 %v1521, %v1520
        %v1603 = vpack.c.b16 %v1523, %v1522
        %v1604 = vpack.c.b16 %v1525, %v1524
        %v1605 = vpack.c.b16 %v1527, %v1526
        %v1606 = vpack.c.b16 %v1529, %v1528
        %v1607 = vpack.c.b16 %v1531, %v1530
        %v1608 = vpack.c.b16 %v1533, %v1532
        %v1609 = vpack.c.b16 %v1535, %v1534
        %v1610 = vpack.c.b16 %v1537, %v1536
        %v1611 = vpack.c.b16 %v1539, %v1538
        %1684 = vmatprep.subr.bf16.mxu0 0
        %1685 = vmatpush1.bf16.msra.mxu0 %v1547
        %1686 = vmatprep.subr.bf16.mxu0 0
        %1687 = vmatpush1.bf16.msra.mxu0 %v1546
        %1688 = vmatprep.subr.bf16.mxu0 0
        %1689 = vmatpush1.bf16.msra.mxu0 %v1545
        %1690 = vmatprep.subr.bf16.mxu0 0
        %1691 = vmatpush1.bf16.msra.mxu0 %v1544
        %1692 = vmatprep.subr.bf16.mxu0 0
        %1693 = vmatpush1.bf16.msra.mxu0 %v1543
        %1694 = vmatprep.subr.bf16.mxu0 0
        %1695 = vmatpush1.bf16.msra.mxu0 %v1542
        %1696 = vmatprep.subr.bf16.mxu0 0
        %1697 = vmatpush1.bf16.msra.mxu0 %v1541
        %1698 = vmatprep.subr.bf16.mxu0 0
        %1699 = vmatpush1.bf16.msra.mxu0 %v1540
        %1700 = vmatprep.subr.bf16.mxu0 0
        %1701 = vmatpush2.bf16.msra.mxu0 %v1555
        %1702 = vmatprep.subr.bf16.mxu0 0
        %1703 = vmatpush2.bf16.msra.mxu0 %v1554
        %1704 = vmatprep.subr.bf16.mxu0 0
        %1705 = vmatpush2.bf16.msra.mxu0 %v1553
        %1706 = vmatprep.subr.bf16.mxu0 0
        %1707 = vmatpush2.bf16.msra.mxu0 %v1552
        %1708 = vmatprep.subr.bf16.mxu0 0
        %1709 = vmatpush2.bf16.msra.mxu0 %v1551
        %1710 = vmatprep.subr.bf16.mxu0 0
        %1711 = vmatpush2.bf16.msra.mxu0 %v1550
        %1712 = vmatprep.subr.bf16.mxu0 0
        %1713 = vmatpush2.bf16.msra.mxu0 %v1549
        %1714 = vmatprep.subr.bf16.mxu0 0
        %1715 = vmatpush2.bf16.msra.mxu0 %v1548
        %1716 = vmatprep.mubr.bf16.mxu0 %v924
        %1717 = vmatmul.mubr.bf16.gmra.mxu0 %v900
        %v1718 = vpop.f32.mrf.mxu0
        %v1719 = vadd.f32 %v1250, %v1718
        %v1720 = vpop.f32.mrf.mxu0
        %v1721 = vpop.f32.mrf.mxu0
        %v1722 = vadd.f32 %v1250, %v1721
        %v1723 = vpop.f32.mrf.mxu0
        %1724 = vmatprep.mubr.bf16.mxu0 %v925
        %1725 = vmatmul.mubr.bf16.gmra.mxu0 %v901
        %v1726 = vpop.f32.mrf.mxu0
        %v1727 = vadd.f32 %v1250, %v1726
        %v1728 = vpop.f32.mrf.mxu0
        %v1729 = vpop.f32.mrf.mxu0
        %v1730 = vadd.f32 %v1250, %v1729
        %v1731 = vpop.f32.mrf.mxu0
        %1732 = vmatprep.mubr.bf16.mxu0 %v926
        %1733 = vmatmul.mubr.bf16.gmra.mxu0 %v902
        %v1734 = vpop.f32.mrf.mxu0
        %v1735 = vadd.f32 %v1250, %v1734
        %v1736 = vpop.f32.mrf.mxu0
        %v1737 = vpop.f32.mrf.mxu0
        %v1738 = vadd.f32 %v1250, %v1737
        %v1739 = vpop.f32.mrf.mxu0
        %1740 = vmatprep.mubr.bf16.mxu0 %v927
        %1741 = vmatmul.mubr.bf16.gmra.mxu0 %v903
        %v1742 = vpop.f32.mrf.mxu0
        %v1743 = vadd.f32 %v1250, %v1742
        %v1744 = vpop.f32.mrf.mxu0
        %v1745 = vpop.f32.mrf.mxu0
        %v1746 = vadd.f32 %v1250, %v1745
        %v1747 = vpop.f32.mrf.mxu0
        %1748 = vmatprep.mubr.bf16.mxu0 %v928
        %1749 = vmatmul.mubr.bf16.gmra.mxu0 %v904
        %v1750 = vpop.f32.mrf.mxu0
        %v1751 = vadd.f32 %v1250, %v1750
        %v1752 = vpop.f32.mrf.mxu0
        %v1753 = vpop.f32.mrf.mxu0
        %v1754 = vadd.f32 %v1250, %v1753
        %v1755 = vpop.f32.mrf.mxu0
        %1756 = vmatprep.mubr.bf16.mxu0 %v929
        %1757 = vmatmul.mubr.bf16.gmra.mxu0 %v905
        %v1758 = vpop.f32.mrf.mxu0
        %v1759 = vadd.f32 %v1250, %v1758
        %v1760 = vpop.f32.mrf.mxu0
        %v1761 = vpop.f32.mrf.mxu0
        %v1762 = vadd.f32 %v1250, %v1761
        %v1763 = vpop.f32.mrf.mxu0
        %1764 = vmatprep.mubr.bf16.mxu0 %v930
        %1765 = vmatmul.mubr.bf16.gmra.mxu0 %v906
        %v1766 = vpop.f32.mrf.mxu0
        %v1767 = vadd.f32 %v1250, %v1766
        %v1768 = vpop.f32.mrf.mxu0
        %v1769 = vpop.f32.mrf.mxu0
        %v1770 = vadd.f32 %v1250, %v1769
        %v1771 = vpop.f32.mrf.mxu0
        %1772 = vmatprep.mubr.bf16.mxu0 %v931
        %1773 = vmatmul.mubr.bf16.gmra.mxu0 %v907
        %v1774 = vpop.f32.mrf.mxu0
        %v1775 = vadd.f32 %v1250, %v1774
        %v1776 = vpop.f32.mrf.mxu0
        %v1777 = vpop.f32.mrf.mxu0
        %v1778 = vadd.f32 %v1250, %v1777
        %v1779 = vpop.f32.mrf.mxu0
        %1780 = vdwg.mxu0
        %1781 = vmatprep.subr.bf16.mxu0 0
        %1782 = vmatpush1.bf16.msra.mxu0 %v1563
        %1783 = vmatprep.subr.bf16.mxu0 0
        %1784 = vmatpush1.bf16.msra.mxu0 %v1562
        %1785 = vmatprep.subr.bf16.mxu0 0
        %1786 = vmatpush1.bf16.msra.mxu0 %v1561
        %1787 = vmatprep.subr.bf16.mxu0 0
        %1788 = vmatpush1.bf16.msra.mxu0 %v1560
        %1789 = vmatprep.subr.bf16.mxu0 0
        %1790 = vmatpush1.bf16.msra.mxu0 %v1559
        %1791 = vmatprep.subr.bf16.mxu0 0
        %1792 = vmatpush1.bf16.msra.mxu0 %v1558
        %1793 = vmatprep.subr.bf16.mxu0 0
        %1794 = vmatpush1.bf16.msra.mxu0 %v1557
        %1795 = vmatprep.subr.bf16.mxu0 0
        %1796 = vmatpush1.bf16.msra.mxu0 %v1556
        %1797 = vmatprep.subr.bf16.mxu0 0
        %1798 = vmatpush2.bf16.msra.mxu0 %v1571
        %1799 = vmatprep.subr.bf16.mxu0 0
        %1800 = vmatpush2.bf16.msra.mxu0 %v1570
        %1801 = vmatprep.subr.bf16.mxu0 0
        %1802 = vmatpush2.bf16.msra.mxu0 %v1569
        %1803 = vmatprep.subr.bf16.mxu0 0
        %1804 = vmatpush2.bf16.msra.mxu0 %v1568
        %1805 = vmatprep.subr.bf16.mxu0 0
        %1806 = vmatpush2.bf16.msra.mxu0 %v1567
        %1807 = vmatprep.subr.bf16.mxu0 0
        %1808 = vmatpush2.bf16.msra.mxu0 %v1566
        %1809 = vmatprep.subr.bf16.mxu0 0
        %1810 = vmatpush2.bf16.msra.mxu0 %v1565
        %1811 = vmatprep.subr.bf16.mxu0 0
        %1812 = vmatpush2.bf16.msra.mxu0 %v1564
        %1813 = vmatprep.mubr.bf16.mxu0 %v973
        %1814 = vmatmul.mubr.bf16.gmra.mxu0 %v948
        %v1815 = vpop.f32.mrf.mxu0
        %v1816 = vadd.f32 %v1719, %v1815
        %v1817 = vpop.f32.mrf.mxu0
        %v1818 = vpop.f32.mrf.mxu0
        %v1819 = vadd.f32 %v1722, %v1818
        %v1820 = vpop.f32.mrf.mxu0
        %1821 = vmatprep.mubr.bf16.mxu0 %v974
        %1822 = vmatmul.mubr.bf16.gmra.mxu0 %v949
        %v1823 = vpop.f32.mrf.mxu0
        %v1824 = vadd.f32 %v1727, %v1823
        %v1825 = vpop.f32.mrf.mxu0
        %v1826 = vpop.f32.mrf.mxu0
        %v1827 = vadd.f32 %v1730, %v1826
        %v1828 = vpop.f32.mrf.mxu0
        %1829 = vmatprep.mubr.bf16.mxu0 %v975
        %1830 = vmatmul.mubr.bf16.gmra.mxu0 %v950
        %v1831 = vpop.f32.mrf.mxu0
        %v1832 = vadd.f32 %v1735, %v1831
        %v1833 = vpop.f32.mrf.mxu0
        %v1834 = vpop.f32.mrf.mxu0
        %v1835 = vadd.f32 %v1738, %v1834
        %v1836 = vpop.f32.mrf.mxu0
        %1837 = vmatprep.mubr.bf16.mxu0 %v976
        %1838 = vmatmul.mubr.bf16.gmra.mxu0 %v951
        %v1839 = vpop.f32.mrf.mxu0
        %v1840 = vadd.f32 %v1743, %v1839
        %v1841 = vpop.f32.mrf.mxu0
        %v1842 = vpop.f32.mrf.mxu0
        %v1843 = vadd.f32 %v1746, %v1842
        %v1844 = vpop.f32.mrf.mxu0
        %1845 = vmatprep.mubr.bf16.mxu0 %v977
        %1846 = vmatmul.mubr.bf16.gmra.mxu0 %v952
        %v1847 = vpop.f32.mrf.mxu0
        %v1848 = vadd.f32 %v1751, %v1847
        %v1849 = vpop.f32.mrf.mxu0
        %v1850 = vpop.f32.mrf.mxu0
        %v1851 = vadd.f32 %v1754, %v1850
        %v1852 = vpop.f32.mrf.mxu0
        %1853 = vmatprep.mubr.bf16.mxu0 %v978
        %1854 = vmatmul.mubr.bf16.gmra.mxu0 %v953
        %v1855 = vpop.f32.mrf.mxu0
        %v1856 = vadd.f32 %v1759, %v1855
        %v1857 = vpop.f32.mrf.mxu0
        %v1858 = vpop.f32.mrf.mxu0
        %v1859 = vadd.f32 %v1762, %v1858
        %v1860 = vpop.f32.mrf.mxu0
        %1861 = vmatprep.mubr.bf16.mxu0 %v979
        %1862 = vmatmul.mubr.bf16.gmra.mxu0 %v954
        %v1863 = vpop.f32.mrf.mxu0
        %v1864 = vadd.f32 %v1767, %v1863
        %v1865 = vpop.f32.mrf.mxu0
        %v1866 = vpop.f32.mrf.mxu0
        %v1867 = vadd.f32 %v1770, %v1866
        %v1868 = vpop.f32.mrf.mxu0
        %1869 = vmatprep.mubr.bf16.mxu0 %v980
        %1870 = vmatmul.mubr.bf16.gmra.mxu0 %v955
        %v1871 = vpop.f32.mrf.mxu0
        %v1872 = vadd.f32 %v1775, %v1871
        %v1873 = vpop.f32.mrf.mxu0
        %v1874 = vpop.f32.mrf.mxu0
        %v1875 = vadd.f32 %v1778, %v1874
        %v1876 = vpop.f32.mrf.mxu0
        %1877 = vdwg.mxu0
        %1878 = vmatprep.subr.bf16.mxu0 0
        %1879 = vmatpush1.bf16.msra.mxu0 %v1579
        %1880 = vmatprep.subr.bf16.mxu0 0
        %1881 = vmatpush1.bf16.msra.mxu0 %v1578
        %1882 = vmatprep.subr.bf16.mxu0 0
        %1883 = vmatpush1.bf16.msra.mxu0 %v1577
        %1884 = vmatprep.subr.bf16.mxu0 0
        %1885 = vmatpush1.bf16.msra.mxu0 %v1576
        %1886 = vmatprep.subr.bf16.mxu0 0
        %1887 = vmatpush1.bf16.msra.mxu0 %v1575
        %1888 = vmatprep.subr.bf16.mxu0 0
        %1889 = vmatpush1.bf16.msra.mxu0 %v1574
        %1890 = vmatprep.subr.bf16.mxu0 0
        %1891 = vmatpush1.bf16.msra.mxu0 %v1573
        %1892 = vmatprep.subr.bf16.mxu0 0
        %1893 = vmatpush1.bf16.msra.mxu0 %v1572
        %1894 = vmatprep.subr.bf16.mxu0 0
        %1895 = vmatpush2.bf16.msra.mxu0 %v1587
        %1896 = vmatprep.subr.bf16.mxu0 0
        %1897 = vmatpush2.bf16.msra.mxu0 %v1586
        %1898 = vmatprep.subr.bf16.mxu0 0
        %1899 = vmatpush2.bf16.msra.mxu0 %v1585
        %1900 = vmatprep.subr.bf16.mxu0 0
        %1901 = vmatpush2.bf16.msra.mxu0 %v1584
        %1902 = vmatprep.subr.bf16.mxu0 0
        %1903 = vmatpush2.bf16.msra.mxu0 %v1583
        %1904 = vmatprep.subr.bf16.mxu0 0
        %1905 = vmatpush2.bf16.msra.mxu0 %v1582
        %1906 = vmatprep.subr.bf16.mxu0 0
        %1907 = vmatpush2.bf16.msra.mxu0 %v1581
        %1908 = vmatprep.subr.bf16.mxu0 0
        %1909 = vmatpush2.bf16.msra.mxu0 %v1580
        %1910 = vmatprep.mubr.bf16.mxu0 %v1021
        %1911 = vmatmul.mubr.bf16.gmra.mxu0 %v997
        %v1912 = vpop.f32.mrf.mxu0
        %v1913 = vadd.f32 %v1816, %v1912
        %v1914 = vpop.f32.mrf.mxu0
        %v1915 = vpop.f32.mrf.mxu0
        %v1916 = vadd.f32 %v1819, %v1915
        %v1917 = vpop.f32.mrf.mxu0
        %1918 = vmatprep.mubr.bf16.mxu0 %v1022
        %1919 = vmatmul.mubr.bf16.gmra.mxu0 %v998
        %v1920 = vpop.f32.mrf.mxu0
        %v1921 = vadd.f32 %v1824, %v1920
        %v1922 = vpop.f32.mrf.mxu0
        %v1923 = vpop.f32.mrf.mxu0
        %v1924 = vadd.f32 %v1827, %v1923
        %v1925 = vpop.f32.mrf.mxu0
        %1926 = vmatprep.mubr.bf16.mxu0 %v1023
        %1927 = vmatmul.mubr.bf16.gmra.mxu0 %v999
        %v1928 = vpop.f32.mrf.mxu0
        %v1929 = vadd.f32 %v1832, %v1928
        %v1930 = vpop.f32.mrf.mxu0
        %v1931 = vpop.f32.mrf.mxu0
        %v1932 = vadd.f32 %v1835, %v1931
        %v1933 = vpop.f32.mrf.mxu0
        %1934 = vmatprep.mubr.bf16.mxu0 %v1024
        %1935 = vmatmul.mubr.bf16.gmra.mxu0 %v1000
        %v1936 = vpop.f32.mrf.mxu0
        %v1937 = vadd.f32 %v1840, %v1936
        %v1938 = vpop.f32.mrf.mxu0
        %v1939 = vpop.f32.mrf.mxu0
        %v1940 = vadd.f32 %v1843, %v1939
        %v1941 = vpop.f32.mrf.mxu0
        %1942 = vmatprep.mubr.bf16.mxu0 %v1025
        %1943 = vmatmul.mubr.bf16.gmra.mxu0 %v1001
        %v1944 = vpop.f32.mrf.mxu0
        %v1945 = vadd.f32 %v1848, %v1944
        %v1946 = vpop.f32.mrf.mxu0
        %v1947 = vpop.f32.mrf.mxu0
        %v1948 = vadd.f32 %v1851, %v1947
        %v1949 = vpop.f32.mrf.mxu0
        %1950 = vmatprep.mubr.bf16.mxu0 %v1026
        %1951 = vmatmul.mubr.bf16.gmra.mxu0 %v1002
        %v1952 = vpop.f32.mrf.mxu0
        %v1953 = vadd.f32 %v1856, %v1952
        %v1954 = vpop.f32.mrf.mxu0
        %v1955 = vpop.f32.mrf.mxu0
        %v1956 = vadd.f32 %v1859, %v1955
        %v1957 = vpop.f32.mrf.mxu0
        %1958 = vmatprep.mubr.bf16.mxu0 %v1027
        %1959 = vmatmul.mubr.bf16.gmra.mxu0 %v1003
        %v1960 = vpop.f32.mrf.mxu0
        %v1961 = vadd.f32 %v1864, %v1960
        %v1962 = vpop.f32.mrf.mxu0
        %v1963 = vpop.f32.mrf.mxu0
        %v1964 = vadd.f32 %v1867, %v1963
        %v1965 = vpop.f32.mrf.mxu0
        %1966 = vmatprep.mubr.bf16.mxu0 %v1028
        %1967 = vmatmul.mubr.bf16.gmra.mxu0 %v1004
        %v1968 = vpop.f32.mrf.mxu0
        %v1969 = vadd.f32 %v1872, %v1968
        %v1970 = vpop.f32.mrf.mxu0
        %v1971 = vpop.f32.mrf.mxu0
        %v1972 = vadd.f32 %v1875, %v1971
        %v1973 = vpop.f32.mrf.mxu0
        %1974 = vdwg.mxu0
        %1975 = vmatprep.subr.bf16.mxu0 0
        %1976 = vmatpush1.bf16.msra.mxu0 %v1595
        %1977 = vmatprep.subr.bf16.mxu0 0
        %1978 = vmatpush1.bf16.msra.mxu0 %v1594
        %1979 = vmatprep.subr.bf16.mxu0 0
        %1980 = vmatpush1.bf16.msra.mxu0 %v1593
        %1981 = vmatprep.subr.bf16.mxu0 0
        %1982 = vmatpush1.bf16.msra.mxu0 %v1592
        %1983 = vmatprep.subr.bf16.mxu0 0
        %1984 = vmatpush1.bf16.msra.mxu0 %v1591
        %1985 = vmatprep.subr.bf16.mxu0 0
        %1986 = vmatpush1.bf16.msra.mxu0 %v1590
        %1987 = vmatprep.subr.bf16.mxu0 0
        %1988 = vmatpush1.bf16.msra.mxu0 %v1589
        %1989 = vmatprep.subr.bf16.mxu0 0
        %1990 = vmatpush1.bf16.msra.mxu0 %v1588
        %1991 = vmatprep.subr.bf16.mxu0 0
        %1992 = vmatpush2.bf16.msra.mxu0 %v1603
        %1993 = vmatprep.subr.bf16.mxu0 0
        %1994 = vmatpush2.bf16.msra.mxu0 %v1602
        %1995 = vmatprep.subr.bf16.mxu0 0
        %1996 = vmatpush2.bf16.msra.mxu0 %v1601
        %1997 = vmatprep.subr.bf16.mxu0 0
        %1998 = vmatpush2.bf16.msra.mxu0 %v1600
        %1999 = vmatprep.subr.bf16.mxu0 0
        %2000 = vmatpush2.bf16.msra.mxu0 %v1599
        %2001 = vmatprep.subr.bf16.mxu0 0
        %2002 = vmatpush2.bf16.msra.mxu0 %v1598
        %2003 = vmatprep.subr.bf16.mxu0 0
        %2004 = vmatpush2.bf16.msra.mxu0 %v1597
        %2005 = vmatprep.subr.bf16.mxu0 0
        %2006 = vmatpush2.bf16.msra.mxu0 %v1596
        %2007 = vmatprep.mubr.bf16.mxu0 %v1070
        %2008 = vmatmul.mubr.bf16.gmra.mxu0 %v1046
        %v2009 = vpop.f32.mrf.mxu0
        %v2010 = vadd.f32 %v1913, %v2009
        %v2011 = vpop.f32.mrf.mxu0
        %v2012 = vpop.f32.mrf.mxu0
        %v2013 = vadd.f32 %v1916, %v2012
        %v2014 = vpop.f32.mrf.mxu0
        %2015 = vmatprep.mubr.bf16.mxu0 %v1071
        %2016 = vmatmul.mubr.bf16.gmra.mxu0 %v1047
        %v2017 = vpop.f32.mrf.mxu0
        %v2018 = vadd.f32 %v1921, %v2017
        %v2019 = vpop.f32.mrf.mxu0
        %v2020 = vpop.f32.mrf.mxu0
        %v2021 = vadd.f32 %v1924, %v2020
        %v2022 = vpop.f32.mrf.mxu0
        %2023 = vmatprep.mubr.bf16.mxu0 %v1072
        %2024 = vmatmul.mubr.bf16.gmra.mxu0 %v1048
        %v2025 = vpop.f32.mrf.mxu0
        %v2026 = vadd.f32 %v1929, %v2025
        %v2027 = vpop.f32.mrf.mxu0
        %v2028 = vpop.f32.mrf.mxu0
        %v2029 = vadd.f32 %v1932, %v2028
        %v2030 = vpop.f32.mrf.mxu0
        %2031 = vmatprep.mubr.bf16.mxu0 %v1073
        %2032 = vmatmul.mubr.bf16.gmra.mxu0 %v1049
        %v2033 = vpop.f32.mrf.mxu0
        %v2034 = vadd.f32 %v1937, %v2033
        %v2035 = vpop.f32.mrf.mxu0
        %v2036 = vpop.f32.mrf.mxu0
        %v2037 = vadd.f32 %v1940, %v2036
        %v2038 = vpop.f32.mrf.mxu0
        %2039 = vmatprep.mubr.bf16.mxu0 %v1074
        %2040 = vmatmul.mubr.bf16.gmra.mxu0 %v1050
        %v2041 = vpop.f32.mrf.mxu0
        %v2042 = vadd.f32 %v1945, %v2041
        %v2043 = vpop.f32.mrf.mxu0
        %v2044 = vpop.f32.mrf.mxu0
        %v2045 = vadd.f32 %v1948, %v2044
        %v2046 = vpop.f32.mrf.mxu0
        %2047 = vmatprep.mubr.bf16.mxu0 %v1075
        %2048 = vmatmul.mubr.bf16.gmra.mxu0 %v1051
        %v2049 = vpop.f32.mrf.mxu0
        %v2050 = vadd.f32 %v1953, %v2049
        %v2051 = vpop.f32.mrf.mxu0
        %v2052 = vpop.f32.mrf.mxu0
        %v2053 = vadd.f32 %v1956, %v2052
        %v2054 = vpop.f32.mrf.mxu0
        %2055 = vmatprep.mubr.bf16.mxu0 %v1076
        %2056 = vmatmul.mubr.bf16.gmra.mxu0 %v1052
        %v2057 = vpop.f32.mrf.mxu0
        %v2058 = vadd.f32 %v1961, %v2057
        %v2059 = vpop.f32.mrf.mxu0
        %v2060 = vpop.f32.mrf.mxu0
        %v2061 = vadd.f32 %v1964, %v2060
        %v2062 = vpop.f32.mrf.mxu0
        %2063 = vmatprep.mubr.bf16.mxu0 %v1077
        %2064 = vmatmul.mubr.bf16.gmra.mxu0 %v1053
        %v2065 = vpop.f32.mrf.mxu0
        %v2066 = vadd.f32 %v1969, %v2065
        %v2067 = vpop.f32.mrf.mxu0
        %v2068 = vpop.f32.mrf.mxu0
        %v2069 = vadd.f32 %v1972, %v2068
        %v2070 = vpop.f32.mrf.mxu0
        %2071 = vdwg.mxu0
        %2072 = vmatprep.subr.bf16.mxu0 0
        %2073 = vmatpush1.bf16.msra.mxu0 %v1611
        %2074 = vmatprep.subr.bf16.mxu0 0
        %2075 = vmatpush1.bf16.msra.mxu0 %v1610
        %2076 = vmatprep.subr.bf16.mxu0 0
        %2077 = vmatpush1.bf16.msra.mxu0 %v1609
        %2078 = vmatprep.subr.bf16.mxu0 0
        %2079 = vmatpush1.bf16.msra.mxu0 %v1608
        %2080 = vmatprep.subr.bf16.mxu0 0
        %2081 = vmatpush1.bf16.msra.mxu0 %v1607
        %2082 = vmatprep.subr.bf16.mxu0 0
        %2083 = vmatpush1.bf16.msra.mxu0 %v1606
        %2084 = vmatprep.subr.bf16.mxu0 0
        %2085 = vmatpush1.bf16.msra.mxu0 %v1605
        %2086 = vmatprep.subr.bf16.mxu0 0
        %2087 = vmatpush1.bf16.msra.mxu0 %v1604
        %2088 = vmatprep.subr.bf16.mxu0 0
        %2089 = vmatpush2.bf16.msra.mxu0 0
        %2090 = vmatprep.subr.bf16.mxu0 0
        %2091 = vmatpush2.bf16.msra.mxu0 0
        %2092 = vmatprep.subr.bf16.mxu0 0
        %2093 = vmatpush2.bf16.msra.mxu0 0
        %2094 = vmatprep.subr.bf16.mxu0 0
        %2095 = vmatpush2.bf16.msra.mxu0 0
        %2096 = vmatprep.subr.bf16.mxu0 0
        %2097 = vmatpush2.bf16.msra.mxu0 0
        %2098 = vmatprep.subr.bf16.mxu0 0
        %2099 = vmatpush2.bf16.msra.mxu0 0
        %2100 = vmatprep.subr.bf16.mxu0 0
        %2101 = vmatpush2.bf16.msra.mxu0 0
        %2102 = vmatprep.subr.bf16.mxu0 0
        %2103 = vmatpush2.bf16.msra.mxu0 0
        %2104 = vmatprep.mubr.bf16.mxu0 0
        %2105 = vmatmul.mubr.bf16.gmra.mxu0 %v1094
        %v2106 = vpop.f32.mrf.mxu0
        %v2107 = vadd.f32 %v2010, %v2106
        %v2108 = vpop.f32.mrf.mxu0
        %v2109 = vpop.f32.mrf.mxu0
        %v2110 = vadd.f32 %v2013, %v2109
        %v2111 = vpop.f32.mrf.mxu0
        %2112 = vmatprep.mubr.bf16.mxu0 0
        %2113 = vmatmul.mubr.bf16.gmra.mxu0 %v1095
        %v2114 = vpop.f32.mrf.mxu0
        %v2115 = vadd.f32 %v2018, %v2114
        %v2116 = vpop.f32.mrf.mxu0
        %v2117 = vpop.f32.mrf.mxu0
        %v2118 = vadd.f32 %v2021, %v2117
        %v2119 = vpop.f32.mrf.mxu0
        %2120 = vmatprep.mubr.bf16.mxu0 0
        %2121 = vmatmul.mubr.bf16.gmra.mxu0 %v1096
        %v2122 = vpop.f32.mrf.mxu0
        %v2123 = vadd.f32 %v2026, %v2122
        %v2124 = vpop.f32.mrf.mxu0
        %v2125 = vpop.f32.mrf.mxu0
        %v2126 = vadd.f32 %v2029, %v2125
        %v2127 = vpop.f32.mrf.mxu0
        %2128 = vmatprep.mubr.bf16.mxu0 0
        %2129 = vmatmul.mubr.bf16.gmra.mxu0 %v1097
        %v2130 = vpop.f32.mrf.mxu0
        %v2131 = vadd.f32 %v2034, %v2130
        %v2132 = vpop.f32.mrf.mxu0
        %v2133 = vpop.f32.mrf.mxu0
        %v2134 = vadd.f32 %v2037, %v2133
        %v2135 = vpop.f32.mrf.mxu0
        %2136 = vmatprep.mubr.bf16.mxu0 0
        %2137 = vmatmul.mubr.bf16.gmra.mxu0 %v1098
        %v2138 = vpop.f32.mrf.mxu0
        %v2139 = vadd.f32 %v2042, %v2138
        %v2140 = vpop.f32.mrf.mxu0
        %v2141 = vpop.f32.mrf.mxu0
        %v2142 = vadd.f32 %v2045, %v2141
        %v2143 = vpop.f32.mrf.mxu0
        %2144 = vmatprep.mubr.bf16.mxu0 0
        %2145 = vmatmul.mubr.bf16.gmra.mxu0 %v1099
        %v2146 = vpop.f32.mrf.mxu0
        %v2147 = vadd.f32 %v2050, %v2146
        %v2148 = vpop.f32.mrf.mxu0
        %v2149 = vpop.f32.mrf.mxu0
        %v2150 = vadd.f32 %v2053, %v2149
        %v2151 = vpop.f32.mrf.mxu0
        %2152 = vmatprep.mubr.bf16.mxu0 0
        %2153 = vmatmul.mubr.bf16.gmra.mxu0 %v1100
        %v2154 = vpop.f32.mrf.mxu0
        %v2155 = vadd.f32 %v2058, %v2154
        %v2156 = vpop.f32.mrf.mxu0
        %v2157 = vpop.f32.mrf.mxu0
        %v2158 = vadd.f32 %v2061, %v2157
        %v2159 = vpop.f32.mrf.mxu0
        %2160 = vmatprep.mubr.bf16.mxu0 0
        %2161 = vmatmul.mubr.bf16.gmra.mxu0 %v1101
        %v2162 = vpop.f32.mrf.mxu0
        %v2163 = vadd.f32 %v2066, %v2162
        %v2164 = vpop.f32.mrf.mxu0
        %v2165 = vpop.f32.mrf.mxu0
        %v2166 = vadd.f32 %v2069, %v2165
        %v2167 = vpop.f32.mrf.mxu0
        %2168 = vdwg.mxu0
        %v2169 = vmax.f32 %v2107, 0.0
        %v2170 = vmax.f32 %v2110, 0.0
        %v2171 = vmax.f32 %v2115, 0.0
        %v2172 = vmax.f32 %v2118, 0.0
        %v2173 = vmax.f32 %v2123, 0.0
        %v2174 = vmax.f32 %v2126, 0.0
        %v2175 = vmax.f32 %v2131, 0.0
        %v2176 = vmax.f32 %v2134, 0.0
        %v2177 = vmax.f32 %v2139, 0.0
        %v2178 = vmax.f32 %v2142, 0.0
        %v2179 = vmax.f32 %v2147, 0.0
        %v2180 = vmax.f32 %v2150, 0.0
        %v2181 = vmax.f32 %v2155, 0.0
        %v2182 = vmax.f32 %v2158, 0.0
        %v2183 = vmax.f32 %v2163, 0.0
        %v2184 = vmax.f32 %v2166, 0.0
        %v2185 = vpack.c.bf16 %v2170, %v2169
        %v2186 = vpack.c.bf16 %v2172, %v2171
        %v2187 = vpack.c.bf16 %v2174, %v2173
        %v2188 = vpack.c.bf16 %v2176, %v2175
        %v2189 = vpack.c.bf16 %v2178, %v2177
        %v2190 = vpack.c.bf16 %v2180, %v2179
        %v2191 = vpack.c.bf16 %v2182, %v2181
        %v2192 = vpack.c.bf16 %v2184, %v2183
        %v2193 = vld [vmem:[#allocation12] sm:$0xf]
        %v2194 = vld [vmem:[#allocation12 + $0x4] sm:$0xf]
        %v2195 = vld [vmem:[#allocation12 + $0x8] sm:$0xf]
        %v2196 = vld [vmem:[#allocation12 + $0xc] sm:$0xf]
        %v2197 = vld [vmem:[#allocation12 + $0x10] sm:$0xf]
        %v2198 = vld [vmem:[#allocation12 + $0x14] sm:$0xf]
        %v2199 = vld [vmem:[#allocation12 + $0x18] sm:$0xf]
        %v2200 = vld [vmem:[#allocation12 + $0x1c] sm:$0xf]
        %v2201 = vld [vmem:[#allocation12 + $0x20] sm:$0xf]
        %v2202 = vld [vmem:[#allocation12 + $0x24] sm:$0xf]
        %v2203 = vld [vmem:[#allocation12 + $0x28] sm:$0xf]
        %v2204 = vld [vmem:[#allocation12 + $0x2c] sm:$0xf]
        %v2205 = vld [vmem:[#allocation12 + $0x30] sm:$0xf]
        %v2206 = vld [vmem:[#allocation12 + $0x34] sm:$0xf]
        %v2207 = vld [vmem:[#allocation12 + $0x38] sm:$0xf]
        %v2208 = vld [vmem:[#allocation12 + $0x3c] sm:$0xf]
        %v2210 = vlaneseq
        %v2211 = vshrl.u32 %v2210, 7
        %v2212 = vsub.s32 0, %v2211
        %v2213 = vrot.slane %v540, %v2212
        %v2231 = vunpack.c.l.b16 %v2193
        %v2232 = vunpack.c.l.b16 %v2194
        %v2233 = vunpack.c.l.b16 %v2195
        %v2234 = vunpack.c.l.b16 %v2196
        %v2235 = vunpack.c.l.b16 %v2197
        %v2236 = vunpack.c.l.b16 %v2198
        %v2237 = vunpack.c.l.b16 %v2199
        %v2238 = vunpack.c.l.b16 %v2200
        %v2239 = vunpack.c.l.b16 %v2201
        %v2240 = vunpack.c.l.b16 %v2202
        %v2241 = vunpack.c.l.b16 %v2203
        %v2242 = vunpack.c.l.b16 %v2204
        %v2243 = vunpack.c.l.b16 %v2205
        %v2244 = vunpack.c.l.b16 %v2206
        %v2245 = vunpack.c.l.b16 %v2207
        %v2246 = vunpack.c.l.b16 %v2208
        %v2247 = vpack.c.b16 %v2232, %v2231
        %v2248 = vpack.c.b16 %v2234, %v2233
        %v2249 = vpack.c.b16 %v2236, %v2235
        %v2250 = vpack.c.b16 %v2238, %v2237
        %v2251 = vpack.c.b16 %v2240, %v2239
        %v2252 = vpack.c.b16 %v2242, %v2241
        %v2253 = vpack.c.b16 %v2244, %v2243
        %v2254 = vpack.c.b16 %v2246, %v2245
        %2263 = vmatprep.subr.bf16.mxu0 0
        %2264 = vmatpush1.bf16.msra.mxu0 %v2254
        %2265 = vmatprep.subr.bf16.mxu0 0
        %2266 = vmatpush1.bf16.msra.mxu0 %v2253
        %2267 = vmatprep.subr.bf16.mxu0 0
        %2268 = vmatpush1.bf16.msra.mxu0 %v2252
        %2269 = vmatprep.subr.bf16.mxu0 0
        %2270 = vmatpush1.bf16.msra.mxu0 %v2251
        %2271 = vmatprep.subr.bf16.mxu0 0
        %2272 = vmatpush1.bf16.msra.mxu0 %v2250
        %2273 = vmatprep.subr.bf16.mxu0 0
        %2274 = vmatpush1.bf16.msra.mxu0 %v2249
        %2275 = vmatprep.subr.bf16.mxu0 0
        %2276 = vmatpush1.bf16.msra.mxu0 %v2248
        %2277 = vmatprep.subr.bf16.mxu0 0
        %2278 = vmatpush1.bf16.msra.mxu0 %v2247
        %2279 = vmatprep.subr.bf16.mxu0 0
        %2280 = vmatpush2.bf16.msra.mxu0 0
        %2281 = vmatprep.subr.bf16.mxu0 0
        %2282 = vmatpush2.bf16.msra.mxu0 0
        %2283 = vmatprep.subr.bf16.mxu0 0
        %2284 = vmatpush2.bf16.msra.mxu0 0
        %2285 = vmatprep.subr.bf16.mxu0 0
        %2286 = vmatpush2.bf16.msra.mxu0 0
        %2287 = vmatprep.subr.bf16.mxu0 0
        %2288 = vmatpush2.bf16.msra.mxu0 0
        %2289 = vmatprep.subr.bf16.mxu0 0
        %2290 = vmatpush2.bf16.msra.mxu0 0
        %2291 = vmatprep.subr.bf16.mxu0 0
        %2292 = vmatpush2.bf16.msra.mxu0 0
        %2293 = vmatprep.subr.bf16.mxu0 0
        %2294 = vmatpush2.bf16.msra.mxu0 0
        %2295 = vmatprep.mubr.bf16.mxu0 0
        %2296 = vmatmul.mubr.bf16.gmra.mxu0 %v2185
        %v2297 = vpop.f32.mrf.mxu0
        %v2298 = vadd.f32 %v2213, %v2297
        %v2299 = vpop.f32.mrf.mxu0
        %v2300 = vpop.f32.mrf.mxu0
        %v2301 = vadd.f32 %v2213, %v2300
        %v2302 = vpop.f32.mrf.mxu0
        %2303 = vmatprep.mubr.bf16.mxu0 0
        %2304 = vmatmul.mubr.bf16.gmra.mxu0 %v2186
        %v2305 = vpop.f32.mrf.mxu0
        %v2306 = vadd.f32 %v2213, %v2305
        %v2307 = vpop.f32.mrf.mxu0
        %v2308 = vpop.f32.mrf.mxu0
        %v2309 = vadd.f32 %v2213, %v2308
        %v2310 = vpop.f32.mrf.mxu0
        %2311 = vmatprep.mubr.bf16.mxu0 0
        %2312 = vmatmul.mubr.bf16.gmra.mxu0 %v2187
        %v2313 = vpop.f32.mrf.mxu0
        %v2314 = vadd.f32 %v2213, %v2313
        %v2315 = vpop.f32.mrf.mxu0
        %v2316 = vpop.f32.mrf.mxu0
        %v2317 = vadd.f32 %v2213, %v2316
        %v2318 = vpop.f32.mrf.mxu0
        %2319 = vmatprep.mubr.bf16.mxu0 0
        %2320 = vmatmul.mubr.bf16.gmra.mxu0 %v2188
        %v2321 = vpop.f32.mrf.mxu0
        %v2322 = vadd.f32 %v2213, %v2321
        %v2323 = vpop.f32.mrf.mxu0
        %v2324 = vpop.f32.mrf.mxu0
        %v2325 = vadd.f32 %v2213, %v2324
        %v2326 = vpop.f32.mrf.mxu0
        %2327 = vmatprep.mubr.bf16.mxu0 0
        %2328 = vmatmul.mubr.bf16.gmra.mxu0 %v2189
        %v2329 = vpop.f32.mrf.mxu0
        %v2330 = vadd.f32 %v2213, %v2329
        %v2331 = vpop.f32.mrf.mxu0
        %v2332 = vpop.f32.mrf.mxu0
        %v2333 = vadd.f32 %v2213, %v2332
        %v2334 = vpop.f32.mrf.mxu0
        %2335 = vmatprep.mubr.bf16.mxu0 0
        %2336 = vmatmul.mubr.bf16.gmra.mxu0 %v2190
        %v2337 = vpop.f32.mrf.mxu0
        %v2338 = vadd.f32 %v2213, %v2337
        %v2339 = vpop.f32.mrf.mxu0
        %v2340 = vpop.f32.mrf.mxu0
        %v2341 = vadd.f32 %v2213, %v2340
        %v2342 = vpop.f32.mrf.mxu0
        %2343 = vmatprep.mubr.bf16.mxu0 0
        %2344 = vmatmul.mubr.bf16.gmra.mxu0 %v2191
        %v2345 = vpop.f32.mrf.mxu0
        %v2346 = vadd.f32 %v2213, %v2345
        %v2347 = vpop.f32.mrf.mxu0
        %v2348 = vpop.f32.mrf.mxu0
        %v2349 = vadd.f32 %v2213, %v2348
        %v2350 = vpop.f32.mrf.mxu0
        %2351 = vmatprep.mubr.bf16.mxu0 0
        %2352 = vmatmul.mubr.bf16.gmra.mxu0 %v2192
        %v2353 = vpop.f32.mrf.mxu0
        %v2354 = vadd.f32 %v2213, %v2353
        %v2355 = vpop.f32.mrf.mxu0
        %v2356 = vpop.f32.mrf.mxu0
        %v2357 = vadd.f32 %v2213, %v2356
        %v2358 = vpop.f32.mrf.mxu0
        %2359 = vdwg.mxu0
        %v2360 = vmax.f32 %v2298, 0.0
        %v2361 = vmax.f32 %v2301, 0.0
        %v2362 = vmax.f32 %v2306, 0.0
        %v2363 = vmax.f32 %v2309, 0.0
        %v2364 = vmax.f32 %v2314, 0.0
        %v2365 = vmax.f32 %v2317, 0.0
        %v2366 = vmax.f32 %v2322, 0.0
        %v2367 = vmax.f32 %v2325, 0.0
        %v2368 = vmax.f32 %v2330, 0.0
        %v2369 = vmax.f32 %v2333, 0.0
        %v2370 = vmax.f32 %v2338, 0.0
        %v2371 = vmax.f32 %v2341, 0.0
        %v2372 = vmax.f32 %v2346, 0.0
        %v2373 = vmax.f32 %v2349, 0.0
        %v2374 = vmax.f32 %v2354, 0.0
        %v2375 = vmax.f32 %v2357, 0.0
        %v2376 = vadd.f32 %v2360, %v541
        %v2377 = vadd.f32 %v2361, %v542
        %v2378 = vadd.f32 %v2362, %v543
        %v2379 = vadd.f32 %v2363, %v544
        %v2380 = vadd.f32 %v2364, %v545
        %v2381 = vadd.f32 %v2365, %v546
        %v2382 = vadd.f32 %v2366, %v547
        %v2383 = vadd.f32 %v2367, %v548
        %v2384 = vadd.f32 %v2368, %v549
        %v2385 = vadd.f32 %v2369, %v550
        %v2386 = vadd.f32 %v2370, %v551
        %v2387 = vadd.f32 %v2371, %v552
        %v2388 = vadd.f32 %v2372, %v553
        %v2389 = vadd.f32 %v2373, %v554
        %v2390 = vadd.f32 %v2374, %v555
        %v2391 = vadd.f32 %v2375, %v556
        %2392 = vst [vmem:[%s524] sm:$0xff] %v2376
        %2393 = vst [vmem:[%s524 + $0x8] sm:$0xff] %v2377
        %2394 = vst [vmem:[%s524 + $0x10] sm:$0xff] %v2378
        %2395 = vst [vmem:[%s524 + $0x18] sm:$0xff] %v2379
        %2396 = vst [vmem:[%s524 + $0x20] sm:$0xff] %v2380
        %2397 = vst [vmem:[%s524 + $0x28] sm:$0xff] %v2381
        %2398 = vst [vmem:[%s524 + $0x30] sm:$0xff] %v2382
        %2399 = vst [vmem:[%s524 + $0x38] sm:$0xff] %v2383
        %2400 = vst [vmem:[%s524 + $0x40] sm:$0xff] %v2384
        %2401 = vst [vmem:[%s524 + $0x48] sm:$0xff] %v2385
        %2402 = vst [vmem:[%s524 + $0x50] sm:$0xff] %v2386
        %2403 = vst [vmem:[%s524 + $0x58] sm:$0xff] %v2387
        %2404 = vst [vmem:[%s524 + $0x60] sm:$0xff] %v2388
        %2405 = vst [vmem:[%s524 + $0x68] sm:$0xff] %v2389
        %2406 = vst [vmem:[%s524 + $0x70] sm:$0xff] %v2390
        %2407 = vst [vmem:[%s524 + $0x78] sm:$0xff] %v2391
        %s2408 = sand.u32 %s279, 1
        %s2409 = scalar_lea.sflag [#allocation5], %s2408
        %s2410 = sand.u32 %s279, 1
        %s2411 = smul.addr %s2410, 128
        %s2412 = scalar_lea.vmem [#allocation14], %s2411
        // Predicated region
        $region81: #{tpu_custom_call.1} parent=55 // pred_check
          %p2413 = pneg %p289
        $region82: #{tpu_custom_call.1} parent=55 // pred_check_branch
          %2415 = sbr.rel (%p2413) target = $region84
        $region83: #{tpu_custom_call.1} parent=55 // pred_region
          %s2416 = smul.u32 8, %s36
          %s2418 = ssub.s32 2048, 2048
          %2419 = vsyncadd %s2409, %s2418
          %s2420 = smul.addr %s2416, 2
          %s2421 = smul.addr %s35, 32
          %s2422 = sadd.s32 %s2420, %s2421
          %s2423 = smul.addr %s2422, 128
          %s2424 = scalar_lea.hbm %s9, %s2423
          %s2425 = sshll.u32 %s2412, 4
          %s2426 = int_to_ptr.vmem [resolvable:$true] %s2425
          %2431 = dma.vmem_to_hbm [thread:$0]  %s2426, 2048, %s2424, %s2409, 128, 128, 8
        $region84: #{tpu_custom_call.1} parent=55 // pred_fallthru
          _
      $region56: #{tpu_custom_call.1} parent=5 // pred_fallthru
        _
      %p2432 = scmp.le.s32.totalorder 2, %s26
      // Predicated region
      $region85: #{tpu_custom_call.1} parent=5 // pred_check
        %p2433 = pneg %p2432
      $region86: #{tpu_custom_call.1} parent=5 // pred_check_branch
        %2435 = sbr.rel (%p2433) target = $region88
      $region87: #{tpu_custom_call.1} parent=5 // pred_region
        %s2436 = ssub.s32 %s26, 2
        // Predicated region
        $region89: #{tpu_custom_call.1} parent=87 // pred_check
          %p2437 = pneg %p295
        $region90: #{tpu_custom_call.1} parent=87 // pred_check_branch
          %2439 = sbr.rel (%p2437) target = $region92
        $region91: #{tpu_custom_call.1} parent=87 // pred_region
          %s2440 = sand.u32 %s280, 1
          %s2441 = scalar_lea.sflag [#allocation5], %s2440
          %s2442 = sand.u32 %s280, 1
          %s2443 = smul.addr %s2442, 128
          %s2444 = scalar_lea.vmem [#allocation14], %s2443
          %2445 = dma.done %s2441, 2048
        $region92: #{tpu_custom_call.1} parent=87 // pred_fallthru
          _
      $region88: #{tpu_custom_call.1} parent=5 // pred_fallthru
        _
    $region6: #{tpu_custom_call.1} parent=1 // loop_footer
      %s30 = sadd.s32 1, %s26
    $region7: #{tpu_custom_call.1} parent=1 // loop_footer_branch
      %25 = sbr.rel target = $region3
    $region8: #{tpu_custom_call.1} parent=1 // loop_exit
      _
    %2446 = vsyncpa [#allocation4], 1
    %s2447 = scalar_lea.sflag [#allocation4], 1
    %2448 = vsyncpa %s2447, 1
    %2449 = vsyncpa [#allocation7], 1
    %s2450 = scalar_lea.sflag [#allocation7], 1
    %2451 = vsyncpa %s2450, 1
    %2452 = vsyncpa [#allocation10], 1
    %2453 = vsyncpa [#allocation13], 1
    %2454 = vsyncpa [#allocation5], 1
    %s2455 = scalar_lea.sflag [#allocation5], 1
    %2456 = vsyncpa %s2455, 1

</llo_original>
